<compile_context>
chip_gen: v7x
topology: tpu7x:2x2x1
jax: 0.10.0
libtpu: 0.0.40
codegen_flags: <defaults>
</compile_context>

<pallas_src>
import math

import jax
import jax.numpy as jnp
from jax import lax
from jax.experimental import pallas as pl
from jax.experimental.pallas import tpu as pltpu

# ----------------------- static model constants (from __init__) ----------------
NUM_HEATER_NODES = 12
NUM_PIPE_NODES = 26            # case 0
NUM_BRANCH_NODES = 3
N_NODES = NUM_HEATER_NODES + NUM_PIPE_NODES + NUM_BRANCH_NODES   # 41
N_PAD = 48                     # node axis padded to a multiple of 8 sublanes
N_CHAN = 5
N_SAMPLES = 128                # synthetic monte-carlo width (lane dim)

ARRHENIUS_A = 1800000.0 / 60.0
ARRHENIUS_B = 6050.0
C_TO_K = 273.0
DENSITY_WATER = 997.0
SPECIFIC_HEAT_WATER = 4186.8

WATTS = 5500.0
HEATER_POWER = WATTS * 1.89 / (3600.0 * 57.86)
HEATER_DECAY = WATTS * 0.1 * 1.89 / (3600.0 * 57.86)
HEATING_ELEMENTS = (3, 9)
SET_POINT = 48.0               # constructor argument, fixed deterministically

HEATER_MIXING_COEFF = 0.3
PIPE_VELOCITY = 3.04           # case 0
PIPE_LENGTH = 1.0
PIPE_DIAMETER = 0.019
PIPE_RADIUS = PIPE_DIAMETER / 2.0
SHOWER_DIAMETER = 0.012
SHOWER_RADIUS = SHOWER_DIAMETER / 2.0
# TODO(synk): htc_pipe / htc_branch are undefined globals in the source module;
#             fixed here to a deterministic heat-transfer coefficient.
HTC_PIPE = 10.0
HTC_BRANCH = 10.0
TANK_VOLUME = 295.0
PIPE_OUTFLOW = math.pi * PIPE_RADIUS ** 2 * PIPE_VELOCITY * 1000.0
SHOWER_OUTFLOW = math.pi * SHOWER_RADIUS ** 2 * PIPE_VELOCITY * 1000.0
SHOWER_START = 1.0

HEATER_NODE_VOL = TANK_VOLUME / NUM_HEATER_NODES
MIX_RATE = HEATER_MIXING_COEFF / HEATER_NODE_VOL
PIPE_ADV = PIPE_VELOCITY / PIPE_LENGTH
PIPE_HEAT_RATE = -4.0 * HTC_PIPE / (SPECIFIC_HEAT_WATER * PIPE_DIAMETER
                                    * DENSITY_WATER * PIPE_VELOCITY)
BRANCH_HEAT_RATE = -4.0 * HTC_BRANCH / (SPECIFIC_HEAT_WATER * SHOWER_RADIUS
                                        * DENSITY_WATER * PIPE_VELOCITY)

LEG_TEMP_DECAY_UB = (float("inf"), 70.0, 65.0, 60.0, 55.0, 50.0, 45.0, 42.0, 37.0, 30.0)
LEG_TEMP_DECAY_RATES = (-0.0741, -0.0833, -0.0333, -0.00666, -5.69e-05, 0.0,
                        4.82e-05, 4.73e-05, 3.08e-05, 2.3e-05)
LEG_CHL_DECAY_UB = (float("inf"), 0.35, 0.15, 0.01)
LEG_CHL_DECAY_RATES = (-0.0231, -0.00192, -0.00182, 0.0)

_SAMPLE_BLOCK = 512            # lane block when sharding wide MC batches over cores


def _piecewise(xs, ubs, ys):
    # torch `piecewise`: sequential masked assignment, last matching bound wins.
    # ubs[0] == inf, so every element is initialised with ys[0].
    res = jnp.full_like(xs, ys[0])
    for i in range(1, len(ys)):
        res = jnp.where(xs < ubs[i], ys[i], res)
    return res


# ------------------------------ the Pallas kernel -------------------------------
def _legionella_kernel(scal_ref, aux_ref, dens_ref, out_ref):
    """d/dt of the state; layout [channel=5, node=N_PAD, sample=block]."""
    NH, NPIPE = NUM_HEATER_NODES, NUM_PIPE_NODES

    # ---- scalars (SMEM) ---------------------------------------------------------
    t = scal_ref[0]
    shower_dur = scal_ref[1]
    ml_chl = scal_ref[2]
    ml_leg = scal_ref[3]
    env_temp = scal_ref[4]

    # ---- per-sample auxiliary rows (single [8, S] VMEM buffer) --------------------
    mlt = aux_ref[0:1, :]        # main line temperature   [1, S]
    toc = aux_ref[1:2, :]        # total organic carbon    [1, S]
    slr = aux_ref[2:3, :]        # sloughing rate          [1, S]

    # ---- state --------------------------------------------------------------------
    x = dens_ref[...]            # [5, N_PAD, S]
    vol = x[:4]                  # temp / chlorine / legionella / sloughed
    temps, chls, legs, sloughs, bfs = x[0], x[1], x[2], x[3], x[4]

    # ---- scalar shower / heater schedule --------------------------------------------
    shower_on = jnp.where(
        jnp.logical_and(t < SHOWER_START + shower_dur, SHOWER_START < t), 1.0, 0.0)
    branch_flow_rate = SHOWER_OUTFLOW * shower_on
    recirc_rate = -SHOWER_OUTFLOW * shower_on + PIPE_OUTFLOW
    intake_rate = SHOWER_OUTFLOW * shower_on
    early = (t - SHOWER_START) < 5.0 * 60.0
    sluff_chl_decay = jnp.where(early, -0.46 / 60.0, -0.1 / 60.0) * shower_on
    sluff_rate = jnp.where(early, 1.3 / 60.0, 0.06 / 60.0) * shower_on

    # ---- per-node segment masks, built once ([N_PAD, 1], padded rows all-zero) ------
    nidx = lax.broadcasted_iota(jnp.int32, (N_PAD, 1), 0)
    f32 = lambda b: b.astype(jnp.float32)
    m_heater = f32(nidx < NH)                                           # 0..11
    m_pipe = f32(jnp.logical_and(nidx >= NH, nidx < NH + NPIPE))        # 12..37
    m_branch = f32(jnp.logical_and(nidx >= NH + NPIPE, nidx < N_NODES)) # 38..40
    m_mix_below = f32(jnp.logical_and(nidx >= 1, nidx < NH))            # 1..11
    m_mix_above = f32(nidx < NH - 1)                                    # 0..10
    m_row0 = f32(nidx == 0)
    m_bhead = f32(nidx == NH + NPIPE)                                   # 38
    m_btail = f32(jnp.logical_and(nidx > NH + NPIPE, nidx < N_NODES))   # 39..40
    m_top7 = f32(jnp.logical_and(nidx >= NH - 7, nidx < NH))            # 5..11
    m_sluff = f32(jnp.logical_and(nidx >= NH, nidx < N_NODES))          # pipes+branch
    m_elem = f32(jnp.logical_or(nidx == HEATING_ELEMENTS[0],
                                nidx == HEATING_ELEMENTS[1]))

    # ---- advection / mixing for all 4 volume channels at once ------------------------
    # Upstream / downstream neighbours via XLU sublane rolls on the node axis.
    # Rows whose rolled neighbour is meaningless (heater row 0, branch head 38,
    # padded rows) carry a zero rate below and/or are fixed up explicitly.
    prev = pltpu.roll(vol, 1, axis=1)              # vol[:, n-1, :]
    nxt = pltpu.roll(vol, N_PAD - 1, axis=1)       # vol[:, n+1, :]  (roll by -1)

    rate_prev = (MIX_RATE * m_mix_below + PIPE_ADV * m_pipe
                 + branch_flow_rate * m_btail)      # [N_PAD, 1]
    rate_next = MIX_RATE * m_mix_above

    h0 = vol[:, 0:1, :]                             # heater node 0
    last_pipe = vol[:, NH + NPIPE - 1:NH + NPIPE, :]  # pipe node 25 (row 37)
    bhead_src = vol[:, NH + 12:NH + 13, :]          # pipe node 12 (row 24) feeds branch
    intake = jnp.stack([mlt,
                        jnp.zeros_like(mlt) + ml_chl,
                        jnp.zeros_like(mlt) + ml_leg,
                        jnp.zeros_like(mlt)], axis=0)   # [4, 1, S]
    row0_extra = (recirc_rate * (last_pipe - h0)
                  + intake_rate * (intake - h0)) * (1.0 / HEATER_NODE_VOL)

    base = (rate_prev * (prev - vol)
            + rate_next * (nxt - vol)
            + (branch_flow_rate * m_bhead) * (bhead_src - vol)
            + m_row0 * row0_extra)                  # [4, N_PAD, S]

    # ---- channel 0: heating elements + heat loss to environment ----------------------
    top_temp = jnp.sum(temps * m_top7, axis=0, keepdims=True) * (1.0 / 7.0)  # [1, S]
    heater_on = top_temp < (SET_POINT - 1.0)
    heat_flux = jnp.where(heater_on, HEATER_POWER * m_elem, -HEATER_DECAY)   # [N_PAD, S]
    src_temp = (m_heater * heat_flux
                + (PIPE_HEAT_RATE * m_pipe + BRANCH_HEAT_RATE * m_branch)
                * (temps - env_temp))

    # ---- channel 1: chlorine Arrhenius decay ------------------------------------------
    chl_decay = (-ARRHENIUS_A) * toc * jnp.exp(-ARRHENIUS_B / (temps + C_TO_K))
    src_chl = chl_decay * chls

    # ---- channel 2: legionella piecewise temperature / chlorine response ---------------
    leg_temp_decay = _piecewise(temps, LEG_TEMP_DECAY_UB, LEG_TEMP_DECAY_RATES)
    leg_chl_decay = _piecewise(chls, LEG_CHL_DECAY_UB, LEG_CHL_DECAY_RATES)
    src_leg = (leg_temp_decay + leg_chl_decay) * legs

    # ---- channel 3 + biofilm: sloughing -------------------------------------------------
    sluff_rows = sluff_rate * m_sluff               # [N_PAD, 1]
    src_slough = (sluff_rows * bfs
                  + (sluff_chl_decay * slr) * (chls * leg_temp_decay * sloughs))
    d_bf = -sluff_rows * bfs

    d_vol = base + jnp.stack([src_temp, src_chl, src_leg, src_slough], axis=0)
    out_ref[...] = jnp.concatenate([d_vol, d_bf[None]], axis=0)   # one stacked store


# ------------------------------- wrappers / layout ---------------------------------
def _rhs_pallas(scalars, aux, state_cns):
    c, n_pad, s = state_cns.shape
    sb = _SAMPLE_BLOCK if (s > _SAMPLE_BLOCK and s % _SAMPLE_BLOCK == 0) else s
    grid = (s // sb,)
    return pl.pallas_call(
        _legionella_kernel,
        out_shape=jax.ShapeDtypeStruct((c, n_pad, s), jnp.float32),
        grid=grid,
        in_specs=[
            pl.BlockSpec(memory_space=pltpu.MemorySpace.SMEM),        # 5 scalars
            pl.BlockSpec((8, sb), lambda i: (0, i)),                  # aux rows
            pl.BlockSpec((N_CHAN, n_pad, sb), lambda i: (0, 0, i)),   # state
        ],
        out_specs=pl.BlockSpec((N_CHAN, n_pad, sb), lambda i: (0, 0, i)),
        compiler_params=pltpu.CompilerParams(
            dimension_semantics=("parallel",)),      # shards samples on v7x 2-TC
    )(scalars, aux, state_cns)


def pack_scalars(t, shower_duration, main_line_chl, main_line_leg, env_temp):
    return jnp.stack([jnp.asarray(t, jnp.float32),
                      jnp.asarray(shower_duration, jnp.float32),
                      jnp.asarray(main_line_chl, jnp.float32),
                      jnp.asarray(main_line_leg, jnp.float32),
                      jnp.asarray(env_temp, jnp.float32)])


def pack_aux(main_line_temp, toc, sloughing_rate):
    """Fold the three per-sample vectors into one sublane-aligned [8, S] buffer."""
    s = main_line_temp.shape[0]
    aux = jnp.zeros((8, s), jnp.float32)
    aux = aux.at[0].set(main_line_temp.astype(jnp.float32))
    aux = aux.at[1].set(toc.astype(jnp.float32))
    aux = aux.at[2].set(sloughing_rate.astype(jnp.float32))
    return aux


def to_kernel_layout(densities):
    """[node, channel, sample] (PyTorch layout) -> padded [channel, N_PAD, sample]."""
    d = jnp.transpose(densities.astype(jnp.float32), (1, 0, 2))
    return jnp.pad(d, ((0, 0), (0, N_PAD - N_NODES), (0, 0)))


def from_kernel_layout(d_cns):
    """padded [channel, N_PAD, sample] -> PyTorch [node, channel, sample]."""
    return jnp.transpose(d_cns[:, :N_NODES, :], (1, 0, 2))


@jax.jit
def legionella_rhs(t, state_cns, aux, shower_duration, main_line_chl,
                   main_line_leg, env_temp):
    """Hot-path RHS: state stays in padded kernel layout, no per-call transposes.
    Padded rows (41..47) always receive an exactly-zero derivative, so a solver
    can integrate the padded state directly."""
    scal = pack_scalars(t, shower_duration, main_line_chl, main_line_leg, env_temp)
    return _rhs_pallas(scal, aux, state_cns)


@jax.jit
def legionella_forward(t, densities, main_line_temp, toc, sloughing_rate,
                       shower_duration, main_line_chl, main_line_leg, env_temp):
    """PyTorch-layout compatibility wrapper (layout conversion at this boundary only)."""
    aux = pack_aux(main_line_temp, toc, sloughing_rate)
    state = to_kernel_layout(densities)
    scal = pack_scalars(t, shower_duration, main_line_chl, main_line_leg, env_temp)
    return from_kernel_layout(_rhs_pallas(scal, aux, state))


# ------------------------ pure-JAX reference (PyTorch transcription) ------------------
def _reference_forward(t, densities, main_line_temp, toc, sloughing_rate,
                       shower_duration, main_line_chl, main_line_leg, env_temp):
    NH, NP_ = NUM_HEATER_NODES, NUM_PIPE_NODES
    V = TANK_VOLUME / NH
    vol = densities[:, 0:4]
    heater, pipe, branch = vol[:NH], vol[NH:NH + NP_], vol[NH + NP_:]
    temps, chls, legs, sloughs = vol[:, 0], vol[:, 1], vol[:, 2], vol[:, 3]
    bfs = densities[:, 4]
    heater_temps, pipe_temps, branch_temps = heater[:, 0], pipe[:, 0], branch[:, 0]

    below = jnp.zeros_like(heater).at[1:].set(
        HEATER_MIXING_COEFF * (heater[:-1] - heater[1:]) / V)
    above = jnp.zeros_like(heater).at[:-1].set(
        HEATER_MIXING_COEFF * (heater[1:] - heater[:-1]) / V)
    heater_d = below + above

    prev_pipe = jnp.concatenate([heater[-1:], pipe[:-1]], axis=0)
    pipe_d = (prev_pipe - pipe) * PIPE_VELOCITY / PIPE_LENGTH

    shower_on = jnp.where(
        jnp.logical_and(t < SHOWER_START + shower_duration, SHOWER_START < t), 1.0, 0.0)
    branch_flow_rate = SHOWER_OUTFLOW * shower_on
    recirc_rate = -SHOWER_OUTFLOW * shower_on + PIPE_OUTFLOW
    recirc_d = recirc_rate * (pipe[-1] - heater[0]) / V
    intake_stack = jnp.stack([main_line_temp,
                              jnp.ones_like(main_line_temp) * main_line_chl,
                              jnp.ones_like(main_line_temp) * main_line_leg,
                              jnp.zeros_like(main_line_temp)], axis=0)
    intake_rate = SHOWER_OUTFLOW * shower_on
    intake_d = intake_rate * (intake_stack - heater[0]) / V
    heater_d = heater_d.at[0].add(recirc_d + intake_d)

    prev_branch = jnp.concatenate([pipe[12:13], branch[:-1]], axis=0)
    branch_d = (prev_branch - branch) * branch_flow_rate

    top_temp = jnp.mean(heater_temps[-7:], axis=0)
    heater_on = top_temp < SET_POINT - 1.0
    heaters = jnp.zeros((NH,), jnp.float32).at[jnp.array(HEATING_ELEMENTS)].set(1.0)
    heat_flux = jnp.where(heater_on[None, :], HEATER_POWER * heaters[:, None],
                          -HEATER_DECAY)
    heater_d = heater_d.at[:, 0].add(heat_flux)
    pipe_d = pipe_d.at[:, 0].add((pipe_temps - env_temp) * PIPE_HEAT_RATE)
    branch_d = branch_d.at[:, 0].add((branch_temps - env_temp) * BRANCH_HEAT_RATE)

    vol_d = jnp.concatenate([heater_d, pipe_d, branch_d], axis=0)
    bf_d = jnp.zeros_like(bfs)
    chl_decay = -ARRHENIUS_A * toc * jnp.exp(-ARRHENIUS_B / (temps + C_TO_K))
    vol_d = vol_d.at[:, 1].add(chl_decay * chls)
    ltd = _piecewise(temps, LEG_TEMP_DECAY_UB, LEG_TEMP_DECAY_RATES)
    vol_d = vol_d.at[:, 2].add(ltd * legs)
    lcd = _piecewise(chls, LEG_CHL_DECAY_UB, LEG_CHL_DECAY_RATES)
    vol_d = vol_d.at[:, 2].add(lcd * legs)
    early = (t - SHOWER_START) < 5.0 * 60.0
    sluff_chl_decay = jnp.where(early, -0.46 / 60.0, -0.1 / 60.0) * shower_on
    sluff_rate = jnp.where(early, 1.3 / 60.0, 0.06 / 60.0) * shower_on
    is_pipe = jnp.zeros((temps.shape[0],), jnp.float32).at[NH:].set(1.0)
    sluff_rates = sluff_rate * is_pipe[:, None]
    bf_d = bf_d + (-sluff_rates * bfs)
    vol_d = vol_d.at[:, 3].add(sluff_rates * bfs)
    vol_d = vol_d.at[:, 3].add(sluff_chl_decay * chls * ltd * sloughs * sloughing_rate)
    return jnp.concatenate([vol_d, bf_d[:, None]], axis=1)


if __name__ == "__main__":
    key = jax.random.PRNGKey(0)
    k = jax.random.split(key, 10)
    S = N_SAMPLES

    # Deterministic synthetic monte-carlo driven parameters (shapes as in module)
    env_temp = jnp.mean(jax.random.uniform(k[0], (S,), minval=20.0, maxval=27.0))
    initial_leg = jnp.mean(jnp.exp(6.6034 + 0.80388 * jax.random.normal(k[1], (S,))))
    main_line_chl = jnp.mean(jax.random.uniform(k[2], (S,), minval=0.01, maxval=4.0))
    main_line_temp = jax.random.uniform(k[3], (S,), minval=16.5, maxval=24.0)
    shower_duration = jnp.mean(jnp.maximum(468.0 + 72.0 * jax.random.normal(k[4], (S,)), 0.0))
    sloughing_rate = jnp.exp(-18.96 + 0.709 * jax.random.normal(k[5], (S,))) / 1e-4
    toc = jax.random.uniform(k[6], (S,), minval=1.0, maxval=3.0)

    # State: [node, channel, sample]  (temp, chlorine, legionella, sloughed, biofilm)
    densities = jnp.stack([
        jax.random.uniform(k[7], (N_NODES, S), minval=20.0, maxval=60.0),
        jax.random.uniform(k[8], (N_NODES, S), minval=0.0, maxval=2.0),
        jnp.exp(jax.random.normal(k[9], (N_NODES, S))) * 10.0,
        jnp.full((N_NODES, S), 0.5),
        jnp.ones((N_NODES, S)),
    ], axis=1).astype(jnp.float32)

    t = jnp.float32(120.0)   # mid-shower

    # Hot path: layout conversion + aux packing happen once at the boundary, as a
    # fixed-step solver loop would do; the per-step RHS is transpose-free.
    aux = pack_aux(main_line_temp, toc, sloughing_rate)
    state = to_kernel_layout(densities)
    d_state = legionella_rhs(t, state, aux, shower_duration, main_line_chl,
                             initial_leg, env_temp)
    jax.block_until_ready(d_state)

    out = from_kernel_layout(d_state)
    out_compat = legionella_forward(t, densities, main_line_temp, toc,
                                    sloughing_rate, shower_duration,
                                    main_line_chl, initial_leg, env_temp)
    ref = _reference_forward(t, densities, main_line_temp, toc, sloughing_rate,
                             shower_duration, main_line_chl, initial_leg, env_temp)

    assert out.shape == (N_NODES, N_CHAN, S)
    assert bool(jnp.all(jnp.isfinite(d_state)))
    # padded rows must carry an exactly-zero derivative (padded-state invariant)
    assert bool(jnp.all(d_state[:, N_NODES:, :] == 0.0))
    assert bool(jnp.allclose(out, ref, rtol=1e-3, atol=1e-3))
    assert bool(jnp.allclose(out_compat, ref, rtol=1e-3, atol=1e-3))
    print("KERNEL_OK")
</pallas_src>

<mosaic_0001>
module attributes {stable_mosaic.version = 11 : i64} {
  func.func @_legionella_kernel(%arg0: i32, %arg1: memref<5xf32, #tpu.memory_space<smem>>, %arg2: memref<8x128xf32, #tpu.memory_space<vmem>>, %arg3: memref<5x48x128xf32, #tpu.memory_space<vmem>>, %arg4: memref<5x48x128xf32, #tpu.memory_space<vmem>>) attributes {dimension_semantics = [#tpu.dimension_semantics<parallel>], iteration_bounds = array<i64: 1>, scalar_prefetch = 0 : i64, scratch_operands = 0 : i64, tpu.core_type = #tpu.core_type<tc>, window_params = [{transform_indices = @transform_0, window_bounds = array<i64: 5>}, {transform_indices = @transform_1, window_bounds = array<i64: 8, 128>}, {transform_indices = @transform_2, window_bounds = array<i64: 5, 48, 128>}, {transform_indices = @transform_3, window_bounds = array<i64: 5, 48, 128>}]} {
    %c0 = arith.constant 0 : index
    %0 = memref.load %arg1[%c0] : memref<5xf32, #tpu.memory_space<smem>>
    %c1 = arith.constant 1 : index
    %1 = memref.load %arg1[%c1] : memref<5xf32, #tpu.memory_space<smem>>
    %c2 = arith.constant 2 : index
    %2 = memref.load %arg1[%c2] : memref<5xf32, #tpu.memory_space<smem>>
    %c3 = arith.constant 3 : index
    %3 = memref.load %arg1[%c3] : memref<5xf32, #tpu.memory_space<smem>>
    %c4 = arith.constant 4 : index
    %4 = memref.load %arg1[%c4] : memref<5xf32, #tpu.memory_space<smem>>
    %c0_0 = arith.constant 0 : index
    %c0_1 = arith.constant 0 : index
    %5 = vector.load %arg2[%c0_0, %c0_1] : memref<8x128xf32, #tpu.memory_space<vmem>>, vector<1x128xf32>
    %c1_2 = arith.constant 1 : index
    %c0_3 = arith.constant 0 : index
    %6 = vector.load %arg2[%c1_2, %c0_3] : memref<8x128xf32, #tpu.memory_space<vmem>>, vector<1x128xf32>
    %c2_4 = arith.constant 2 : index
    %c0_5 = arith.constant 0 : index
    %7 = vector.load %arg2[%c2_4, %c0_5] : memref<8x128xf32, #tpu.memory_space<vmem>>, vector<1x128xf32>
    %c0_6 = arith.constant 0 : index
    %c0_7 = arith.constant 0 : index
    %c0_8 = arith.constant 0 : index
    %8 = vector.load %arg3[%c0_6, %c0_7, %c0_8] : memref<5x48x128xf32, #tpu.memory_space<vmem>>, vector<5x48x128xf32>
    %9 = vector.extract_strided_slice %8 {offsets = [0, 0, 0], sizes = [4, 48, 128], strides = [1, 1, 1]} : vector<5x48x128xf32> to vector<4x48x128xf32>
    %10 = vector.extract_strided_slice %8 {offsets = [0, 0, 0], sizes = [1, 48, 128], strides = [1, 1, 1]} : vector<5x48x128xf32> to vector<1x48x128xf32>
    %11 = vector.shape_cast %10 : vector<1x48x128xf32> to vector<48x128xf32>
    %12 = vector.extract_strided_slice %8 {offsets = [1, 0, 0], sizes = [1, 48, 128], strides = [1, 1, 1]} : vector<5x48x128xf32> to vector<1x48x128xf32>
    %13 = vector.shape_cast %12 : vector<1x48x128xf32> to vector<48x128xf32>
    %14 = vector.extract_strided_slice %8 {offsets = [2, 0, 0], sizes = [1, 48, 128], strides = [1, 1, 1]} : vector<5x48x128xf32> to vector<1x48x128xf32>
    %15 = vector.shape_cast %14 : vector<1x48x128xf32> to vector<48x128xf32>
    %16 = vector.extract_strided_slice %8 {offsets = [3, 0, 0], sizes = [1, 48, 128], strides = [1, 1, 1]} : vector<5x48x128xf32> to vector<1x48x128xf32>
    %17 = vector.shape_cast %16 : vector<1x48x128xf32> to vector<48x128xf32>
    %18 = vector.extract_strided_slice %8 {offsets = [4, 0, 0], sizes = [1, 48, 128], strides = [1, 1, 1]} : vector<5x48x128xf32> to vector<1x48x128xf32>
    %19 = vector.shape_cast %18 : vector<1x48x128xf32> to vector<48x128xf32>
    %cst = arith.constant 1.000000e+00 : f32
    %20 = arith.addf %cst, %1 : f32
    %21 = arith.cmpf olt, %0, %20 : f32
    %cst_9 = arith.constant 1.000000e+00 : f32
    %22 = arith.cmpf ogt, %0, %cst_9 : f32
    %23 = arith.andi %21, %22 : i1
    %cst_10 = arith.constant 1.000000e+00 : f32
    %cst_11 = arith.constant 0.000000e+00 : f32
    %24 = arith.select %23, %cst_10, %cst_11 : f32
    %cst_12 = arith.constant 0.343815893 : f32
    %25 = arith.mulf %cst_12, %24 : f32
    %cst_13 = arith.constant -0.343815893 : f32
    %26 = arith.mulf %cst_13, %24 : f32
    %cst_14 = arith.constant 0.86192739 : f32
    %27 = arith.addf %26, %cst_14 : f32
    %cst_15 = arith.constant 0.343815893 : f32
    %28 = arith.mulf %cst_15, %24 : f32
    %cst_16 = arith.constant 1.000000e+00 : f32
    %29 = arith.subf %0, %cst_16 : f32
    %cst_17 = arith.constant 3.000000e+02 : f32
    %30 = arith.cmpf olt, %29, %cst_17 : f32
    %cst_18 = arith.constant -0.00766666653 : f32
    %cst_19 = arith.constant -0.00166666671 : f32
    %31 = arith.select %30, %cst_18, %cst_19 : f32
    %32 = arith.mulf %31, %24 : f32
    %cst_20 = arith.constant 0.0216666665 : f32
    %cst_21 = arith.constant 1.000000e-03 : f32
    %33 = arith.select %30, %cst_20, %cst_21 : f32
    %34 = arith.mulf %33, %24 : f32
    %35 = tpu.iota {dimensions = array<i32: 0>} : vector<48x1xi32>
    %c12_i32 = arith.constant 12 : i32
    %36 = vector.broadcast %c12_i32 : i32 to vector<48x1xi32>
    %37 = arith.cmpi slt, %35, %36 : vector<48x1xi32>
    %38 = arith.extui %37 : vector<48x1xi1> to vector<48x1xi32>
    %39 = arith.sitofp %38 : vector<48x1xi32> to vector<48x1xf32>
    %c12_i32_22 = arith.constant 12 : i32
    %40 = vector.broadcast %c12_i32_22 : i32 to vector<48x1xi32>
    %41 = arith.cmpi sge, %35, %40 : vector<48x1xi32>
    %c38_i32 = arith.constant 38 : i32
    %42 = vector.broadcast %c38_i32 : i32 to vector<48x1xi32>
    %43 = arith.cmpi slt, %35, %42 : vector<48x1xi32>
    %44 = arith.andi %41, %43 : vector<48x1xi1>
    %45 = arith.extui %44 : vector<48x1xi1> to vector<48x1xi32>
    %46 = arith.sitofp %45 : vector<48x1xi32> to vector<48x1xf32>
    %c38_i32_23 = arith.constant 38 : i32
    %47 = vector.broadcast %c38_i32_23 : i32 to vector<48x1xi32>
    %48 = arith.cmpi sge, %35, %47 : vector<48x1xi32>
    %c41_i32 = arith.constant 41 : i32
    %49 = vector.broadcast %c41_i32 : i32 to vector<48x1xi32>
    %50 = arith.cmpi slt, %35, %49 : vector<48x1xi32>
    %51 = arith.andi %48, %50 : vector<48x1xi1>
    %52 = arith.extui %51 : vector<48x1xi1> to vector<48x1xi32>
    %53 = arith.sitofp %52 : vector<48x1xi32> to vector<48x1xf32>
    %c1_i32 = arith.constant 1 : i32
    %54 = vector.broadcast %c1_i32 : i32 to vector<48x1xi32>
    %55 = arith.cmpi sge, %35, %54 : vector<48x1xi32>
    %c12_i32_24 = arith.constant 12 : i32
    %56 = vector.broadcast %c12_i32_24 : i32 to vector<48x1xi32>
    %57 = arith.cmpi slt, %35, %56 : vector<48x1xi32>
    %58 = arith.andi %55, %57 : vector<48x1xi1>
    %59 = arith.extui %58 : vector<48x1xi1> to vector<48x1xi32>
    %60 = arith.sitofp %59 : vector<48x1xi32> to vector<48x1xf32>
    %c11_i32 = arith.constant 11 : i32
    %61 = vector.broadcast %c11_i32 : i32 to vector<48x1xi32>
    %62 = arith.cmpi slt, %35, %61 : vector<48x1xi32>
    %63 = arith.extui %62 : vector<48x1xi1> to vector<48x1xi32>
    %64 = arith.sitofp %63 : vector<48x1xi32> to vector<48x1xf32>
    %c0_i32 = arith.constant 0 : i32
    %65 = vector.broadcast %c0_i32 : i32 to vector<48x1xi32>
    %66 = arith.cmpi eq, %35, %65 : vector<48x1xi32>
    %67 = arith.extui %66 : vector<48x1xi1> to vector<48x1xi32>
    %68 = arith.sitofp %67 : vector<48x1xi32> to vector<48x1xf32>
    %c38_i32_25 = arith.constant 38 : i32
    %69 = vector.broadcast %c38_i32_25 : i32 to vector<48x1xi32>
    %70 = arith.cmpi eq, %35, %69 : vector<48x1xi32>
    %71 = arith.extui %70 : vector<48x1xi1> to vector<48x1xi32>
    %72 = arith.sitofp %71 : vector<48x1xi32> to vector<48x1xf32>
    %c38_i32_26 = arith.constant 38 : i32
    %73 = vector.broadcast %c38_i32_26 : i32 to vector<48x1xi32>
    %74 = arith.cmpi sgt, %35, %73 : vector<48x1xi32>
    %c41_i32_27 = arith.constant 41 : i32
    %75 = vector.broadcast %c41_i32_27 : i32 to vector<48x1xi32>
    %76 = arith.cmpi slt, %35, %75 : vector<48x1xi32>
    %77 = arith.andi %74, %76 : vector<48x1xi1>
    %78 = arith.extui %77 : vector<48x1xi1> to vector<48x1xi32>
    %79 = arith.sitofp %78 : vector<48x1xi32> to vector<48x1xf32>
    %c5_i32 = arith.constant 5 : i32
    %80 = vector.broadcast %c5_i32 : i32 to vector<48x1xi32>
    %81 = arith.cmpi sge, %35, %80 : vector<48x1xi32>
    %c12_i32_28 = arith.constant 12 : i32
    %82 = vector.broadcast %c12_i32_28 : i32 to vector<48x1xi32>
    %83 = arith.cmpi slt, %35, %82 : vector<48x1xi32>
    %84 = arith.andi %81, %83 : vector<48x1xi1>
    %85 = arith.extui %84 : vector<48x1xi1> to vector<48x1xi32>
    %86 = arith.sitofp %85 : vector<48x1xi32> to vector<48x1xf32>
    %c12_i32_29 = arith.constant 12 : i32
    %87 = vector.broadcast %c12_i32_29 : i32 to vector<48x1xi32>
    %88 = arith.cmpi sge, %35, %87 : vector<48x1xi32>
    %c41_i32_30 = arith.constant 41 : i32
    %89 = vector.broadcast %c41_i32_30 : i32 to vector<48x1xi32>
    %90 = arith.cmpi slt, %35, %89 : vector<48x1xi32>
    %91 = arith.andi %88, %90 : vector<48x1xi1>
    %92 = arith.extui %91 : vector<48x1xi1> to vector<48x1xi32>
    %93 = arith.sitofp %92 : vector<48x1xi32> to vector<48x1xf32>
    %c3_i32 = arith.constant 3 : i32
    %94 = vector.broadcast %c3_i32 : i32 to vector<48x1xi32>
    %95 = arith.cmpi eq, %35, %94 : vector<48x1xi32>
    %c9_i32 = arith.constant 9 : i32
    %96 = vector.broadcast %c9_i32 : i32 to vector<48x1xi32>
    %97 = arith.cmpi eq, %35, %96 : vector<48x1xi32>
    %98 = arith.ori %95, %97 : vector<48x1xi1>
    %99 = arith.extui %98 : vector<48x1xi1> to vector<48x1xi32>
    %100 = arith.sitofp %99 : vector<48x1xi32> to vector<48x1xf32>
    %c1_i32_31 = arith.constant 1 : i32
    %101 = tpu.dynamic_rotate %9 by %c1_i32_31 dim 1 : vector<4x48x128xf32>, i32 -> vector<4x48x128xf32>
    %c47_i32 = arith.constant 47 : i32
    %102 = tpu.dynamic_rotate %9 by %c47_i32 dim 1 : vector<4x48x128xf32>, i32 -> vector<4x48x128xf32>
    %cst_32 = arith.constant 0.0122033898 : f32
    %103 = vector.broadcast %cst_32 : f32 to vector<48x1xf32>
    %104 = arith.mulf %103, %60 : vector<48x1xf32>
    %cst_33 = arith.constant 3.040000e+00 : f32
    %105 = vector.broadcast %cst_33 : f32 to vector<48x1xf32>
    %106 = arith.mulf %105, %46 : vector<48x1xf32>
    %107 = arith.addf %104, %106 : vector<48x1xf32>
    %108 = vector.broadcast %25 : f32 to vector<48x1xf32>
    %109 = arith.mulf %108, %79 : vector<48x1xf32>
    %110 = arith.addf %107, %109 : vector<48x1xf32>
    %cst_34 = arith.constant 0.0122033898 : f32
    %111 = vector.broadcast %cst_34 : f32 to vector<48x1xf32>
    %112 = arith.mulf %111, %64 : vector<48x1xf32>
    %113 = vector.extract_strided_slice %9 {offsets = [0, 0, 0], sizes = [4, 1, 128], strides = [1, 1, 1]} : vector<4x48x128xf32> to vector<4x1x128xf32>
    %114 = vector.extract_strided_slice %9 {offsets = [0, 37, 0], sizes = [4, 1, 128], strides = [1, 1, 1]} : vector<4x48x128xf32> to vector<4x1x128xf32>
    %115 = vector.extract_strided_slice %9 {offsets = [0, 24, 0], sizes = [4, 1, 128], strides = [1, 1, 1]} : vector<4x48x128xf32> to vector<4x1x128xf32>
    %cst_35 = arith.constant 0.000000e+00 : f32
    %116 = vector.broadcast %cst_35 : f32 to vector<1x128xf32>
    %117 = vector.broadcast %2 : f32 to vector<1x128xf32>
    %118 = arith.addf %116, %117 : vector<1x128xf32>
    %cst_36 = arith.constant 0.000000e+00 : f32
    %119 = vector.broadcast %cst_36 : f32 to vector<1x128xf32>
    %120 = vector.broadcast %3 : f32 to vector<1x128xf32>
    %121 = arith.addf %119, %120 : vector<1x128xf32>
    %cst_37 = arith.constant 0.000000e+00 : f32
    %122 = vector.broadcast %cst_37 : f32 to vector<1x128xf32>
    %123 = vector.shape_cast %5 : vector<1x128xf32> to vector<1x1x128xf32>
    %124 = vector.shape_cast %118 : vector<1x128xf32> to vector<1x1x128xf32>
    %125 = vector.shape_cast %121 : vector<1x128xf32> to vector<1x1x128xf32>
    %126 = vector.shape_cast %122 : vector<1x128xf32> to vector<1x1x128xf32>
    %127 = tpu.concatenate %123, %124, %125, %126 in 0 : vector<1x1x128xf32>, vector<1x1x128xf32>, vector<1x1x128xf32>, vector<1x1x128xf32> -> vector<4x1x128xf32>
    %128 = arith.subf %114, %113 : vector<4x1x128xf32>
    %129 = vector.broadcast %27 : f32 to vector<4x1x128xf32>
    %130 = arith.mulf %129, %128 : vector<4x1x128xf32>
    %131 = arith.subf %127, %113 : vector<4x1x128xf32>
    %132 = vector.broadcast %28 : f32 to vector<4x1x128xf32>
    %133 = arith.mulf %132, %131 : vector<4x1x128xf32>
    %134 = arith.addf %130, %133 : vector<4x1x128xf32>
    %cst_38 = arith.constant 0.0406779647 : f32
    %135 = vector.broadcast %cst_38 : f32 to vector<4x1x128xf32>
    %136 = arith.mulf %134, %135 : vector<4x1x128xf32>
    %137 = arith.subf %101, %9 : vector<4x48x128xf32>
    %138 = vector.shape_cast %110 : vector<48x1xf32> to vector<1x48x1xf32>
    %139 = vector.broadcast %138 : vector<1x48x1xf32> to vector<4x48x128xf32>
    %140 = arith.mulf %139, %137 : vector<4x48x128xf32>
    %141 = arith.subf %102, %9 : vector<4x48x128xf32>
    %142 = vector.shape_cast %112 : vector<48x1xf32> to vector<1x48x1xf32>
    %143 = vector.broadcast %142 : vector<1x48x1xf32> to vector<4x48x128xf32>
    %144 = arith.mulf %143, %141 : vector<4x48x128xf32>
    %145 = arith.addf %140, %144 : vector<4x48x128xf32>
    %146 = vector.broadcast %25 : f32 to vector<48x1xf32>
    %147 = arith.mulf %146, %72 : vector<48x1xf32>
    %148 = vector.broadcast %115 : vector<4x1x128xf32> to vector<4x48x128xf32>
    %149 = arith.subf %148, %9 : vector<4x48x128xf32>
    %150 = vector.shape_cast %147 : vector<48x1xf32> to vector<1x48x1xf32>
    %151 = vector.broadcast %150 : vector<1x48x1xf32> to vector<4x48x128xf32>
    %152 = arith.mulf %151, %149 : vector<4x48x128xf32>
    %153 = arith.addf %145, %152 : vector<4x48x128xf32>
    %154 = vector.shape_cast %68 : vector<48x1xf32> to vector<1x48x1xf32>
    %155 = vector.broadcast %154 : vector<1x48x1xf32> to vector<4x48x128xf32>
    %156 = vector.broadcast %136 : vector<4x1x128xf32> to vector<4x48x128xf32>
    %157 = arith.mulf %155, %156 : vector<4x48x128xf32>
    %158 = arith.addf %153, %157 : vector<4x48x128xf32>
    %159 = vector.broadcast %86 : vector<48x1xf32> to vector<48x128xf32>
    %160 = arith.mulf %11, %159 : vector<48x128xf32>
    %cst_39 = arith.constant dense<0.000000e+00> : vector<128xf32>
    %161 = vector.multi_reduction <add>, %160, %cst_39 [0] : vector<48x128xf32> to vector<128xf32>
    %162 = vector.shape_cast %161 : vector<128xf32> to vector<1x128xf32>
    %cst_40 = arith.constant 0.142857149 : f32
    %163 = vector.broadcast %cst_40 : f32 to vector<1x128xf32>
    %164 = arith.mulf %162, %163 : vector<1x128xf32>
    %cst_41 = arith.constant 4.700000e+01 : f32
    %165 = vector.broadcast %cst_41 : f32 to vector<1x128xf32>
    %166 = arith.cmpf olt, %164, %165 : vector<1x128xf32>
    %cst_42 = arith.constant 0.0499049425 : f32
    %167 = vector.broadcast %cst_42 : f32 to vector<48x1xf32>
    %168 = arith.mulf %167, %100 : vector<48x1xf32>
    %cst_43 = arith.constant -0.00499049434 : f32
    %169 = vector.shape_cast %166 : vector<1x128xi1> to vector<1x128xi1>
    %170 = vector.broadcast %169 : vector<1x128xi1> to vector<48x128xi1>
    %171 = vector.shape_cast %168 : vector<48x1xf32> to vector<48x1xf32>
    %172 = vector.broadcast %171 : vector<48x1xf32> to vector<48x128xf32>
    %173 = vector.broadcast %cst_43 : f32 to vector<48x128xf32>
    %174 = arith.select %170, %172, %173 : vector<48x128xi1>, vector<48x128xf32>
    %175 = vector.broadcast %39 : vector<48x1xf32> to vector<48x128xf32>
    %176 = arith.mulf %175, %174 : vector<48x128xf32>
    %cst_44 = arith.constant -1.65903461E-4 : f32
    %177 = vector.broadcast %cst_44 : f32 to vector<48x1xf32>
    %178 = arith.mulf %177, %46 : vector<48x1xf32>
    %cst_45 = arith.constant -5.25360927E-4 : f32
    %179 = vector.broadcast %cst_45 : f32 to vector<48x1xf32>
    %180 = arith.mulf %179, %53 : vector<48x1xf32>
    %181 = arith.addf %178, %180 : vector<48x1xf32>
    %182 = vector.broadcast %4 : f32 to vector<48x128xf32>
    %183 = arith.subf %11, %182 : vector<48x128xf32>
    %184 = vector.broadcast %181 : vector<48x1xf32> to vector<48x128xf32>
    %185 = arith.mulf %184, %183 : vector<48x128xf32>
    %186 = arith.addf %176, %185 : vector<48x128xf32>
    %cst_46 = arith.constant -3.000000e+04 : f32
    %187 = vector.broadcast %cst_46 : f32 to vector<1x128xf32>
    %188 = arith.mulf %187, %6 : vector<1x128xf32>
    %cst_47 = arith.constant 2.730000e+02 : f32
    %189 = vector.broadcast %cst_47 : f32 to vector<48x128xf32>
    %190 = arith.addf %11, %189 : vector<48x128xf32>
    %cst_48 = arith.constant -6.050000e+03 : f32
    %191 = vector.broadcast %cst_48 : f32 to vector<48x128xf32>
    %192 = arith.divf %191, %190 : vector<48x128xf32>
    %193 = math.exp %192 : vector<48x128xf32>
    %194 = vector.broadcast %188 : vector<1x128xf32> to vector<48x128xf32>
    %195 = arith.mulf %194, %193 : vector<48x128xf32>
    %196 = arith.mulf %195, %13 : vector<48x128xf32>
    %cst_49 = arith.constant -7.410000e-02 : f32
    %197 = vector.broadcast %cst_49 : f32 to vector<48x128xf32>
    %cst_50 = arith.constant 7.000000e+01 : f32
    %198 = vector.broadcast %cst_50 : f32 to vector<48x128xf32>
    %199 = arith.cmpf olt, %11, %198 : vector<48x128xf32>
    %cst_51 = arith.constant -8.330000e-02 : f32
    %200 = vector.broadcast %cst_51 : f32 to vector<48x128xf32>
    %201 = arith.select %199, %200, %197 : vector<48x128xi1>, vector<48x128xf32>
    %cst_52 = arith.constant 6.500000e+01 : f32
    %202 = vector.broadcast %cst_52 : f32 to vector<48x128xf32>
    %203 = arith.cmpf olt, %11, %202 : vector<48x128xf32>
    %cst_53 = arith.constant -3.330000e-02 : f32
    %204 = vector.broadcast %cst_53 : f32 to vector<48x128xf32>
    %205 = arith.select %203, %204, %201 : vector<48x128xi1>, vector<48x128xf32>
    %cst_54 = arith.constant 6.000000e+01 : f32
    %206 = vector.broadcast %cst_54 : f32 to vector<48x128xf32>
    %207 = arith.cmpf olt, %11, %206 : vector<48x128xf32>
    %cst_55 = arith.constant -6.660000e-03 : f32
    %208 = vector.broadcast %cst_55 : f32 to vector<48x128xf32>
    %209 = arith.select %207, %208, %205 : vector<48x128xi1>, vector<48x128xf32>
    %cst_56 = arith.constant 5.500000e+01 : f32
    %210 = vector.broadcast %cst_56 : f32 to vector<48x128xf32>
    %211 = arith.cmpf olt, %11, %210 : vector<48x128xf32>
    %cst_57 = arith.constant -5.690000e-05 : f32
    %212 = vector.broadcast %cst_57 : f32 to vector<48x128xf32>
    %213 = arith.select %211, %212, %209 : vector<48x128xi1>, vector<48x128xf32>
    %cst_58 = arith.constant 5.000000e+01 : f32
    %214 = vector.broadcast %cst_58 : f32 to vector<48x128xf32>
    %215 = arith.cmpf olt, %11, %214 : vector<48x128xf32>
    %cst_59 = arith.constant 0.000000e+00 : f32
    %216 = vector.broadcast %cst_59 : f32 to vector<48x128xf32>
    %217 = arith.select %215, %216, %213 : vector<48x128xi1>, vector<48x128xf32>
    %cst_60 = arith.constant 4.500000e+01 : f32
    %218 = vector.broadcast %cst_60 : f32 to vector<48x128xf32>
    %219 = arith.cmpf olt, %11, %218 : vector<48x128xf32>
    %cst_61 = arith.constant 4.820000e-05 : f32
    %220 = vector.broadcast %cst_61 : f32 to vector<48x128xf32>
    %221 = arith.select %219, %220, %217 : vector<48x128xi1>, vector<48x128xf32>
    %cst_62 = arith.constant 4.200000e+01 : f32
    %222 = vector.broadcast %cst_62 : f32 to vector<48x128xf32>
    %223 = arith.cmpf olt, %11, %222 : vector<48x128xf32>
    %cst_63 = arith.constant 4.730000e-05 : f32
    %224 = vector.broadcast %cst_63 : f32 to vector<48x128xf32>
    %225 = arith.select %223, %224, %221 : vector<48x128xi1>, vector<48x128xf32>
    %cst_64 = arith.constant 3.700000e+01 : f32
    %226 = vector.broadcast %cst_64 : f32 to vector<48x128xf32>
    %227 = arith.cmpf olt, %11, %226 : vector<48x128xf32>
    %cst_65 = arith.constant 3.080000e-05 : f32
    %228 = vector.broadcast %cst_65 : f32 to vector<48x128xf32>
    %229 = arith.select %227, %228, %225 : vector<48x128xi1>, vector<48x128xf32>
    %cst_66 = arith.constant 3.000000e+01 : f32
    %230 = vector.broadcast %cst_66 : f32 to vector<48x128xf32>
    %231 = arith.cmpf olt, %11, %230 : vector<48x128xf32>
    %cst_67 = arith.constant 2.300000e-05 : f32
    %232 = vector.broadcast %cst_67 : f32 to vector<48x128xf32>
    %233 = arith.select %231, %232, %229 : vector<48x128xi1>, vector<48x128xf32>
    %cst_68 = arith.constant -2.310000e-02 : f32
    %234 = vector.broadcast %cst_68 : f32 to vector<48x128xf32>
    %cst_69 = arith.constant 3.500000e-01 : f32
    %235 = vector.broadcast %cst_69 : f32 to vector<48x128xf32>
    %236 = arith.cmpf olt, %13, %235 : vector<48x128xf32>
    %cst_70 = arith.constant -1.920000e-03 : f32
    %237 = vector.broadcast %cst_70 : f32 to vector<48x128xf32>
    %238 = arith.select %236, %237, %234 : vector<48x128xi1>, vector<48x128xf32>
    %cst_71 = arith.constant 1.500000e-01 : f32
    %239 = vector.broadcast %cst_71 : f32 to vector<48x128xf32>
    %240 = arith.cmpf olt, %13, %239 : vector<48x128xf32>
    %cst_72 = arith.constant -1.820000e-03 : f32
    %241 = vector.broadcast %cst_72 : f32 to vector<48x128xf32>
    %242 = arith.select %240, %241, %238 : vector<48x128xi1>, vector<48x128xf32>
    %cst_73 = arith.constant 0.00999999977 : f32
    %243 = vector.broadcast %cst_73 : f32 to vector<48x128xf32>
    %244 = arith.cmpf olt, %13, %243 : vector<48x128xf32>
    %cst_74 = arith.constant 0.000000e+00 : f32
    %245 = vector.broadcast %cst_74 : f32 to vector<48x128xf32>
    %246 = arith.select %244, %245, %242 : vector<48x128xi1>, vector<48x128xf32>
    %247 = arith.addf %233, %246 : vector<48x128xf32>
    %248 = arith.mulf %247, %15 : vector<48x128xf32>
    %249 = vector.broadcast %34 : f32 to vector<48x1xf32>
    %250 = arith.mulf %249, %93 : vector<48x1xf32>
    %251 = vector.broadcast %250 : vector<48x1xf32> to vector<48x128xf32>
    %252 = arith.mulf %251, %19 : vector<48x128xf32>
    %253 = vector.broadcast %32 : f32 to vector<1x128xf32>
    %254 = arith.mulf %253, %7 : vector<1x128xf32>
    %255 = arith.mulf %13, %233 : vector<48x128xf32>
    %256 = arith.mulf %255, %17 : vector<48x128xf32>
    %257 = vector.broadcast %254 : vector<1x128xf32> to vector<48x128xf32>
    %258 = arith.mulf %257, %256 : vector<48x128xf32>
    %259 = arith.addf %252, %258 : vector<48x128xf32>
    %cst_75 = arith.constant 0.000000e+00 : f32
    %260 = vector.broadcast %cst_75 : f32 to vector<48x1xf32>
    %261 = arith.subf %260, %250 : vector<48x1xf32>
    %262 = vector.broadcast %261 : vector<48x1xf32> to vector<48x128xf32>
    %263 = arith.mulf %262, %19 : vector<48x128xf32>
    %264 = vector.shape_cast %186 : vector<48x128xf32> to vector<1x48x128xf32>
    %265 = vector.shape_cast %196 : vector<48x128xf32> to vector<1x48x128xf32>
    %266 = vector.shape_cast %248 : vector<48x128xf32> to vector<1x48x128xf32>
    %267 = vector.shape_cast %259 : vector<48x128xf32> to vector<1x48x128xf32>
    %268 = tpu.concatenate %264, %265, %266, %267 in 0 : vector<1x48x128xf32>, vector<1x48x128xf32>, vector<1x48x128xf32>, vector<1x48x128xf32> -> vector<4x48x128xf32>
    %269 = arith.addf %158, %268 : vector<4x48x128xf32>
    %270 = vector.shape_cast %263 : vector<48x128xf32> to vector<1x48x128xf32>
    %271 = tpu.concatenate %269, %270 in 0 : vector<4x48x128xf32>, vector<1x48x128xf32> -> vector<5x48x128xf32>
    %c0_76 = arith.constant 0 : index
    %c0_77 = arith.constant 0 : index
    %c0_78 = arith.constant 0 : index
    %272 = vector.load %arg4[%c0_76, %c0_77, %c0_78] : memref<5x48x128xf32, #tpu.memory_space<vmem>>, vector<5x48x128xf32>
    tpu.vector_store %arg4[%c0_76, %c0_77, %c0_78], %271 {strides = array<i32>} : memref<5x48x128xf32, #tpu.memory_space<vmem>>, vector<5x48x128xf32>,
    return
  }
  func.func @transform_0(%arg0: i32) -> i32 {
    %c0_i32 = arith.constant 0 : i32
    %c0_i32_0 = arith.constant 0 : i32
    return %c0_i32 : i32
  }
  func.func @transform_1(%arg0: i32) -> (i32, i32) {
    %c0_i32 = arith.constant 0 : i32
    %c0_i32_0 = arith.constant 0 : i32
    return %c0_i32, %arg0 : i32, i32
  }
  func.func @transform_2(%arg0: i32) -> (i32, i32, i32) {
    %c0_i32 = arith.constant 0 : i32
    %c0_i32_0 = arith.constant 0 : i32
    %c0_i32_1 = arith.constant 0 : i32
    return %c0_i32, %c0_i32_0, %arg0 : i32, i32, i32
  }
  func.func @transform_3(%arg0: i32) -> (i32, i32, i32) {
    %c0_i32 = arith.constant 0 : i32
    %c0_i32_0 = arith.constant 0 : i32
    %c0_i32_1 = arith.constant 0 : i32
    return %c0_i32, %c0_i32_0, %arg0 : i32, i32, i32
  }
}

</mosaic_0001>

<llo_original>
// kernel: legionella_rhs.1
$region0: #{legionella_rhs.1}
  #allocation0 [shape = 'u32[]', space=smem, size = 0x4, offset = 0x4, fixed_abs, tag = 'smem constant byte address 0x4 - core index']
  #allocation1 [shape = 'u32[144,128]{1,0:T(1,128)}', space=vmem, size = 0x12000, scoped, tag = 'internal scratch']
  %s0 = inlined_call_operand.vmem [shape: f32[5], index: 0, kind: input, shape index: {}]
  %s1 = inlined_call_operand.vmem [shape: f32[8,128], index: 1, kind: input, shape index: {}]
  %s2 = inlined_call_operand.hbm [shape: f32[5,48,128], index: 2, kind: input, shape index: {}]
  %s3 = inlined_call_operand.hbm [shape: f32[5,48,128], index: 3, kind: output, shape index: {}]
  %s4 = sld [smem:[#allocation0]]
  $region30: #{legionella_rhs.1} parent=0
    _
  %s6 = ssub.s32 1, %s4
  %s7 = scalar_select 0, %s6, %s4
  $region1: #{legionella_rhs.1} parent=0
    #allocation2 [shape = 'u8[512]{0}', space=smem, size = 0x200, scoped, tag = 'input window, operand 0, single buffered']
    #allocation3 [shape = 's32[1]{0}', space=sflag, size = 0x4, scoped, tag = 'scoped memory for legionella_rhs.1']
    #allocation4 [shape = 's32[1]{0}', space=sflag, size = 0x4, scoped, tag = 'scoped memory for legionella_rhs.1']
    #allocation5 [shape = 's32[1]{0}', space=sflag, size = 0x4, scoped, tag = 'scoped memory for legionella_rhs.1']
    #allocation6 [shape = 'u8[122880]{0}', space=vmem, size = 0x1e000, scoped, tag = 'input window, operand 2, single buffered']
    #allocation7 [shape = 'u8[122880]{0}', space=vmem, size = 0x1e000, scoped, tag = 'output window, operand 0, single buffered']
    %8 = vsyncpa [#allocation5], 0
    %9 = vsyncpa [#allocation3], 0
    %10 = vsyncpa [#allocation4], 0
    // Predicated region
    $region2: #{legionella_rhs.1} parent=1 // pred_check
      _
    $region3: #{legionella_rhs.1} parent=1 // pred_check_branch
      %12 = sbr.rel (0) target = $region5
    $region4: #{legionella_rhs.1} parent=1 // pred_region
      %s14 = ssub.s32 16, 16
      %15 = vsyncadd [#allocation5], %s14
      %s17 = sshll.u32 %s0, 4
      %s18 = int_to_ptr.vmem [resolvable:$true] %s17
      %20 = dma.vmem_to_smem %s18, 16, [#allocation2], [#allocation5]
    $region5: #{legionella_rhs.1} parent=1 // pred_fallthru
      _
    // Predicated region
    $region6: #{legionella_rhs.1} parent=1 // pred_check
      _
    $region7: #{legionella_rhs.1} parent=1 // pred_check_branch
      %22 = sbr.rel (0) target = $region9
    $region8: #{legionella_rhs.1} parent=1 // pred_region
      _
    $region9: #{legionella_rhs.1} parent=1 // pred_fallthru
      _
    // Predicated region
    $region10: #{legionella_rhs.1} parent=1 // pred_check
      _
    $region11: #{legionella_rhs.1} parent=1 // pred_check_branch
      %24 = sbr.rel (0) target = $region13
    $region12: #{legionella_rhs.1} parent=1 // pred_region
      %s26 = ssub.s32 3840, 3840
      %27 = vsyncadd [#allocation3], %s26
      %s28 = sshll.u32 [#allocation6], 4
      %s29 = int_to_ptr.vmem [resolvable:$true] %s28
      %34 = dma.hbm_to_vmem [thread:$0]  %s2, 3840, %s29, [#allocation3], 128, 128, 8
    $region13: #{legionella_rhs.1} parent=1 // pred_fallthru
      _
    // Predicated region
    $region14: #{legionella_rhs.1} parent=1 // pred_check
      _
    $region15: #{legionella_rhs.1} parent=1 // pred_check_branch
      %36 = sbr.rel (0) target = $region17
    $region16: #{legionella_rhs.1} parent=1 // pred_region
      %37 = dma.done [#allocation5], 16
    $region17: #{legionella_rhs.1} parent=1 // pred_fallthru
      _
    // Predicated region
    $region18: #{legionella_rhs.1} parent=1 // pred_check
      _
    $region19: #{legionella_rhs.1} parent=1 // pred_check_branch
      %39 = sbr.rel (0) target = $region21
    $region20: #{legionella_rhs.1} parent=1 // pred_region
      %40 = dma.done [#allocation3], 3840
    $region21: #{legionella_rhs.1} parent=1 // pred_fallthru
      _
    %41 = sfence
    %s42 = sld [smem:[#allocation2]]
    %s43 = sld [smem:[#allocation2 + $0x1]]
    %s44 = sld [smem:[#allocation2 + $0x2]]
    %s45 = sld [smem:[#allocation2 + $0x3]]
    %s46 = sld [smem:[#allocation2 + $0x4]]
    %v47 = vld [vmem:[%s1] sm:$0x1]
    %v48 = vld [vmem:[%s1 + $0x1] sm:$0x1]
    %v49 = vld [vmem:[%s1 + $0x2] sm:$0x1]
    %v50 = vld [vmem:[#allocation6] sm:$0xff]
    %v51 = vld [vmem:[#allocation6 + $0x8] sm:$0xff]
    %v52 = vld [vmem:[#allocation6 + $0x10] sm:$0xff]
    %v53 = vld [vmem:[#allocation6 + $0x18] sm:$0xff]
    %v54 = vld [vmem:[#allocation6 + $0x20] sm:$0xff]
    %v55 = vld [vmem:[#allocation6 + $0x28] sm:$0xff]
    %v56 = vld [vmem:[#allocation6 + $0x30] sm:$0xff]
    %v57 = vld [vmem:[#allocation6 + $0x38] sm:$0xff]
    %v58 = vld [vmem:[#allocation6 + $0x40] sm:$0xff]
    %v59 = vld [vmem:[#allocation6 + $0x48] sm:$0xff]
    %v60 = vld [vmem:[#allocation6 + $0x50] sm:$0xff]
    %v61 = vld [vmem:[#allocation6 + $0x58] sm:$0xff]
    %v62 = vld [vmem:[#allocation6 + $0x60] sm:$0xff]
    %v63 = vld [vmem:[#allocation6 + $0x68] sm:$0xff]
    %v64 = vld [vmem:[#allocation6 + $0x70] sm:$0xff]
    %v65 = vld [vmem:[#allocation6 + $0x78] sm:$0xff]
    %v66 = vld [vmem:[#allocation6 + $0x80] sm:$0xff]
    %v67 = vld [vmem:[#allocation6 + $0x88] sm:$0xff]
    %v68 = vld [vmem:[#allocation6 + $0x90] sm:$0xff]
    %v69 = vld [vmem:[#allocation6 + $0x98] sm:$0xff]
    %v70 = vld [vmem:[#allocation6 + $0xa0] sm:$0xff]
    %v71 = vld [vmem:[#allocation6 + $0xa8] sm:$0xff]
    %v72 = vld [vmem:[#allocation6 + $0xb0] sm:$0xff]
    %v73 = vld [vmem:[#allocation6 + $0xb8] sm:$0xff]
    %v74 = vld [vmem:[#allocation6 + $0xc0] sm:$0xff]
    %v75 = vld [vmem:[#allocation6 + $0xc8] sm:$0xff]
    %v76 = vld [vmem:[#allocation6 + $0xd0] sm:$0xff]
    %v77 = vld [vmem:[#allocation6 + $0xd8] sm:$0xff]
    %v78 = vld [vmem:[#allocation6 + $0xe0] sm:$0xff]
    %v79 = vld [vmem:[#allocation6 + $0xe8] sm:$0xff]
    %s80 = sadd.f32 %s43, 1.0
    %p81 = scmp.lt.f32.partialorder %s42, %s80
    %p82 = scmp.gt.f32.partialorder %s42, 1.0
    %p83 = pnand %p81, %p82
    %p84 = pneg %p83
    %s85 = scalar_select %p84, 1.0, 0.0
    %s86 = smul.f32 %s85, 0.3438159
    %s87 = smul.f32 %s85, -0.3438159
    %s88 = sadd.f32 %s87, 0.8619274
    %s89 = ssub.f32 %s42, 1.0
    %p90 = scmp.lt.f32.partialorder %s89, 300.0
    %s91 = scalar_select %p90, -0.0076666665, -0.0016666667
    %s92 = smul.f32 %s91, %s85
    %s93 = scalar_select %p90, 0.021666666, 0.001
    %s94 = smul.f32 %s93, %s85
    %v95 = vlaneseq
    %v96 = vshrl.u32 %v95, 7
    %v97 = vadd.s32 %v96, 8
    %v98 = vadd.s32 %v96, 16
    %v99 = vadd.s32 %v96, 24
    %v100 = vadd.s32 %v96, 32
    %v101 = vadd.s32 %v96, 40
    %vm102 = vcmp.lt.s32.totalorder %v96, 12
    %vm103 = vcmp.lt.s32.totalorder %v97, 12
    %vm104 = vcmp.lt.s32.totalorder %v98, 12
    %vm105 = vcmp.lt.s32.totalorder %v99, 12
    %vm106 = vcmp.lt.s32.totalorder %v100, 12
    %vm107 = vcmp.lt.s32.totalorder %v101, 12
    %v108 = vsel %vm102, 1, 0
    %v109 = vsel %vm103, 1, 0
    %v110 = vsel %vm104, 1, 0
    %v111 = vsel %vm105, 1, 0
    %v112 = vsel %vm106, 1, 0
    %v113 = vsel %vm107, 1, 0
    %v114 = vcvt.s32.f32 %v108
    %v115 = vcvt.s32.f32 %v109
    %v116 = vcvt.s32.f32 %v110
    %v117 = vcvt.s32.f32 %v111
    %v118 = vcvt.s32.f32 %v112
    %v119 = vcvt.s32.f32 %v113
    %vm120 = vcmp.ge.s32.totalorder %v96, 12
    %vm121 = vcmp.ge.s32.totalorder %v97, 12
    %vm122 = vcmp.ge.s32.totalorder %v98, 12
    %vm123 = vcmp.ge.s32.totalorder %v99, 12
    %vm124 = vcmp.ge.s32.totalorder %v100, 12
    %vm125 = vcmp.ge.s32.totalorder %v101, 12
    %vm126 = vcmp.lt.s32.totalorder %v96, 38
    %vm127 = vcmp.lt.s32.totalorder %v97, 38
    %vm128 = vcmp.lt.s32.totalorder %v98, 38
    %vm129 = vcmp.lt.s32.totalorder %v99, 38
    %vm130 = vcmp.lt.s32.totalorder %v100, 38
    %vm131 = vcmp.lt.s32.totalorder %v101, 38
    %vm132 = vmand %vm120, %vm126
    %vm133 = vmand %vm121, %vm127
    %vm134 = vmand %vm122, %vm128
    %vm135 = vmand %vm123, %vm129
    %vm136 = vmand %vm124, %vm130
    %vm137 = vmand %vm125, %vm131
    %v138 = vsel %vm132, 1, 0
    %v139 = vsel %vm133, 1, 0
    %v140 = vsel %vm134, 1, 0
    %v141 = vsel %vm135, 1, 0
    %v142 = vsel %vm136, 1, 0
    %v143 = vsel %vm137, 1, 0
    %v144 = vcvt.s32.f32 %v138
    %v145 = vcvt.s32.f32 %v139
    %v146 = vcvt.s32.f32 %v140
    %v147 = vcvt.s32.f32 %v141
    %v148 = vcvt.s32.f32 %v142
    %v149 = vcvt.s32.f32 %v143
    %vm150 = vcmp.ge.s32.totalorder %v96, 38
    %vm151 = vcmp.ge.s32.totalorder %v97, 38
    %vm152 = vcmp.ge.s32.totalorder %v98, 38
    %vm153 = vcmp.ge.s32.totalorder %v99, 38
    %vm154 = vcmp.ge.s32.totalorder %v100, 38
    %vm155 = vcmp.ge.s32.totalorder %v101, 38
    %vm156 = vcmp.lt.s32.totalorder %v96, 41
    %vm157 = vcmp.lt.s32.totalorder %v97, 41
    %vm158 = vcmp.lt.s32.totalorder %v98, 41
    %vm159 = vcmp.lt.s32.totalorder %v99, 41
    %vm160 = vcmp.lt.s32.totalorder %v100, 41
    %vm161 = vcmp.lt.s32.totalorder %v101, 41
    %vm162 = vmand %vm150, %vm156
    %vm163 = vmand %vm151, %vm157
    %vm164 = vmand %vm152, %vm158
    %vm165 = vmand %vm153, %vm159
    %vm166 = vmand %vm154, %vm160
    %vm167 = vmand %vm155, %vm161
    %v168 = vsel %vm162, 1, 0
    %v169 = vsel %vm163, 1, 0
    %v170 = vsel %vm164, 1, 0
    %v171 = vsel %vm165, 1, 0
    %v172 = vsel %vm166, 1, 0
    %v173 = vsel %vm167, 1, 0
    %v174 = vcvt.s32.f32 %v168
    %v175 = vcvt.s32.f32 %v169
    %v176 = vcvt.s32.f32 %v170
    %v177 = vcvt.s32.f32 %v171
    %v178 = vcvt.s32.f32 %v172
    %v179 = vcvt.s32.f32 %v173
    %vm180 = vcmp.ge.s32.totalorder %v96, 1
    %vm181 = vcmp.ge.s32.totalorder %v97, 1
    %vm182 = vcmp.ge.s32.totalorder %v98, 1
    %vm183 = vcmp.ge.s32.totalorder %v99, 1
    %vm184 = vcmp.ge.s32.totalorder %v100, 1
    %vm185 = vcmp.ge.s32.totalorder %v101, 1
    %vm186 = vmand %vm180, %vm102
    %vm187 = vmand %vm181, %vm103
    %vm188 = vmand %vm182, %vm104
    %vm189 = vmand %vm183, %vm105
    %vm190 = vmand %vm184, %vm106
    %vm191 = vmand %vm185, %vm107
    %v192 = vsel %vm186, 1, 0
    %v193 = vsel %vm187, 1, 0
    %v194 = vsel %vm188, 1, 0
    %v195 = vsel %vm189, 1, 0
    %v196 = vsel %vm190, 1, 0
    %v197 = vsel %vm191, 1, 0
    %v198 = vcvt.s32.f32 %v192
    %v199 = vcvt.s32.f32 %v193
    %v200 = vcvt.s32.f32 %v194
    %v201 = vcvt.s32.f32 %v195
    %v202 = vcvt.s32.f32 %v196
    %v203 = vcvt.s32.f32 %v197
    %vm204 = vcmp.lt.s32.totalorder %v96, 11
    %vm205 = vcmp.lt.s32.totalorder %v97, 11
    %vm206 = vcmp.lt.s32.totalorder %v98, 11
    %vm207 = vcmp.lt.s32.totalorder %v99, 11
    %vm208 = vcmp.lt.s32.totalorder %v100, 11
    %vm209 = vcmp.lt.s32.totalorder %v101, 11
    %v210 = vsel %vm204, 1, 0
    %v211 = vsel %vm205, 1, 0
    %v212 = vsel %vm206, 1, 0
    %v213 = vsel %vm207, 1, 0
    %v214 = vsel %vm208, 1, 0
    %v215 = vsel %vm209, 1, 0
    %v216 = vcvt.s32.f32 %v210
    %v217 = vcvt.s32.f32 %v211
    %v218 = vcvt.s32.f32 %v212
    %v219 = vcvt.s32.f32 %v213
    %v220 = vcvt.s32.f32 %v214
    %v221 = vcvt.s32.f32 %v215
    %vm222 = vcmp.eq.s32.totalorder %v96, 0
    %vm223 = vcmp.eq.s32.totalorder %v97, 0
    %vm224 = vcmp.eq.s32.totalorder %v98, 0
    %vm225 = vcmp.eq.s32.totalorder %v99, 0
    %vm226 = vcmp.eq.s32.totalorder %v100, 0
    %vm227 = vcmp.eq.s32.totalorder %v101, 0
    %v228 = vsel %vm222, 1, 0
    %v229 = vsel %vm223, 1, 0
    %v230 = vsel %vm224, 1, 0
    %v231 = vsel %vm225, 1, 0
    %v232 = vsel %vm226, 1, 0
    %v233 = vsel %vm227, 1, 0
    %v234 = vcvt.s32.f32 %v228
    %v235 = vcvt.s32.f32 %v229
    %v236 = vcvt.s32.f32 %v230
    %v237 = vcvt.s32.f32 %v231
    %v238 = vcvt.s32.f32 %v232
    %v239 = vcvt.s32.f32 %v233
    %vm240 = vcmp.eq.s32.totalorder %v96, 38
    %vm241 = vcmp.eq.s32.totalorder %v97, 38
    %vm242 = vcmp.eq.s32.totalorder %v98, 38
    %vm243 = vcmp.eq.s32.totalorder %v99, 38
    %vm244 = vcmp.eq.s32.totalorder %v100, 38
    %vm245 = vcmp.eq.s32.totalorder %v101, 38
    %v246 = vsel %vm240, 1, 0
    %v247 = vsel %vm241, 1, 0
    %v248 = vsel %vm242, 1, 0
    %v249 = vsel %vm243, 1, 0
    %v250 = vsel %vm244, 1, 0
    %v251 = vsel %vm245, 1, 0
    %v252 = vcvt.s32.f32 %v246
    %v253 = vcvt.s32.f32 %v247
    %v254 = vcvt.s32.f32 %v248
    %v255 = vcvt.s32.f32 %v249
    %v256 = vcvt.s32.f32 %v250
    %v257 = vcvt.s32.f32 %v251
    %vm258 = vcmp.gt.s32.totalorder %v96, 38
    %vm259 = vcmp.gt.s32.totalorder %v97, 38
    %vm260 = vcmp.gt.s32.totalorder %v98, 38
    %vm261 = vcmp.gt.s32.totalorder %v99, 38
    %vm262 = vcmp.gt.s32.totalorder %v100, 38
    %vm263 = vcmp.gt.s32.totalorder %v101, 38
    %vm264 = vmand %vm258, %vm156
    %vm265 = vmand %vm259, %vm157
    %vm266 = vmand %vm260, %vm158
    %vm267 = vmand %vm261, %vm159
    %vm268 = vmand %vm262, %vm160
    %vm269 = vmand %vm263, %vm161
    %v270 = vsel %vm264, 1, 0
    %v271 = vsel %vm265, 1, 0
    %v272 = vsel %vm266, 1, 0
    %v273 = vsel %vm267, 1, 0
    %v274 = vsel %vm268, 1, 0
    %v275 = vsel %vm269, 1, 0
    %v276 = vcvt.s32.f32 %v270
    %v277 = vcvt.s32.f32 %v271
    %v278 = vcvt.s32.f32 %v272
    %v279 = vcvt.s32.f32 %v273
    %v280 = vcvt.s32.f32 %v274
    %v281 = vcvt.s32.f32 %v275
    %vm282 = vcmp.ge.s32.totalorder %v96, 5
    %vm283 = vcmp.ge.s32.totalorder %v97, 5
    %vm284 = vcmp.ge.s32.totalorder %v98, 5
    %vm285 = vcmp.ge.s32.totalorder %v99, 5
    %vm286 = vcmp.ge.s32.totalorder %v100, 5
    %vm287 = vcmp.ge.s32.totalorder %v101, 5
    %vm288 = vmand %vm282, %vm102
    %vm289 = vmand %vm283, %vm103
    %vm290 = vmand %vm284, %vm104
    %vm291 = vmand %vm285, %vm105
    %vm292 = vmand %vm286, %vm106
    %vm293 = vmand %vm287, %vm107
    %v294 = vsel %vm288, 1, 0
    %v295 = vsel %vm289, 1, 0
    %v296 = vsel %vm290, 1, 0
    %v297 = vsel %vm291, 1, 0
    %v298 = vsel %vm292, 1, 0
    %v299 = vsel %vm293, 1, 0
    %v300 = vcvt.s32.f32 %v294
    %v301 = vcvt.s32.f32 %v295
    %v302 = vcvt.s32.f32 %v296
    %v303 = vcvt.s32.f32 %v297
    %v304 = vcvt.s32.f32 %v298
    %v305 = vcvt.s32.f32 %v299
    %vm306 = vmand %vm120, %vm156
    %vm307 = vmand %vm121, %vm157
    %vm308 = vmand %vm122, %vm158
    %vm309 = vmand %vm123, %vm159
    %vm310 = vmand %vm124, %vm160
    %vm311 = vmand %vm125, %vm161
    %v312 = vsel %vm306, 1, 0
    %v313 = vsel %vm307, 1, 0
    %v314 = vsel %vm308, 1, 0
    %v315 = vsel %vm309, 1, 0
    %v316 = vsel %vm310, 1, 0
    %v317 = vsel %vm311, 1, 0
    %v318 = vcvt.s32.f32 %v312
    %v319 = vcvt.s32.f32 %v313
    %v320 = vcvt.s32.f32 %v314
    %v321 = vcvt.s32.f32 %v315
    %v322 = vcvt.s32.f32 %v316
    %v323 = vcvt.s32.f32 %v317
    %vm324 = vcmp.eq.s32.totalorder %v96, 3
    %vm325 = vcmp.eq.s32.totalorder %v97, 3
    %vm326 = vcmp.eq.s32.totalorder %v98, 3
    %vm327 = vcmp.eq.s32.totalorder %v99, 3
    %vm328 = vcmp.eq.s32.totalorder %v100, 3
    %vm329 = vcmp.eq.s32.totalorder %v101, 3
    %vm330 = vcmp.eq.s32.totalorder %v96, 9
    %vm331 = vcmp.eq.s32.totalorder %v97, 9
    %vm332 = vcmp.eq.s32.totalorder %v98, 9
    %vm333 = vcmp.eq.s32.totalorder %v99, 9
    %vm334 = vcmp.eq.s32.totalorder %v100, 9
    %vm335 = vcmp.eq.s32.totalorder %v101, 9
    %vm336 = vmor %vm324, %vm330
    %vm337 = vmor %vm325, %vm331
    %vm338 = vmor %vm326, %vm332
    %vm339 = vmor %vm327, %vm333
    %vm340 = vmor %vm328, %vm334
    %vm341 = vmor %vm329, %vm335
    %v342 = vsel %vm336, 1, 0
    %v343 = vsel %vm337, 1, 0
    %v344 = vsel %vm338, 1, 0
    %v345 = vsel %vm339, 1, 0
    %v346 = vsel %vm340, 1, 0
    %v347 = vsel %vm341, 1, 0
    %v348 = vcvt.s32.f32 %v342
    %v349 = vcvt.s32.f32 %v343
    %v350 = vcvt.s32.f32 %v344
    %v351 = vcvt.s32.f32 %v345
    %v352 = vcvt.s32.f32 %v346
    %v353 = vcvt.s32.f32 %v347
    %v354 = vrot.slane %v50, 7
    %v355 = vrot.slane %v56, 7
    %v356 = vrot.slane %v62, 7
    %v357 = vrot.slane %v68, 7
    %v358 = vrot.slane %v51, 7
    %v359 = vrot.slane %v57, 7
    %v360 = vrot.slane %v63, 7
    %v361 = vrot.slane %v69, 7
    %v362 = vrot.slane %v52, 7
    %v363 = vrot.slane %v58, 7
    %v364 = vrot.slane %v64, 7
    %v365 = vrot.slane %v70, 7
    %v366 = vrot.slane %v53, 7
    %v367 = vrot.slane %v59, 7
    %v368 = vrot.slane %v65, 7
    %v369 = vrot.slane %v71, 7
    %v370 = vrot.slane %v54, 7
    %v371 = vrot.slane %v60, 7
    %v372 = vrot.slane %v66, 7
    %v373 = vrot.slane %v72, 7
    %v374 = vrot.slane %v55, 7
    %v375 = vrot.slane %v61, 7
    %v376 = vrot.slane %v67, 7
    %v377 = vrot.slane %v73, 7
    %vm378 = vcmp.lt.s32.totalorder %v96, 1
    %v379 = vsel %vm378, %v370, %v374
    %v380 = vsel %vm378, %v371, %v375
    %v381 = vsel %vm378, %v372, %v376
    %v382 = vsel %vm378, %v373, %v377
    %v383 = vsel %vm378, %v366, %v370
    %v384 = vsel %vm378, %v367, %v371
    %v385 = vsel %vm378, %v368, %v372
    %v386 = vsel %vm378, %v369, %v373
    %v387 = vsel %vm378, %v362, %v366
    %v388 = vsel %vm378, %v363, %v367
    %v389 = vsel %vm378, %v364, %v368
    %v390 = vsel %vm378, %v365, %v369
    %v391 = vsel %vm378, %v358, %v362
    %v392 = vsel %vm378, %v359, %v363
    %v393 = vsel %vm378, %v360, %v364
    %v394 = vsel %vm378, %v361, %v365
    %v395 = vsel %vm378, %v354, %v358
    %v396 = vsel %vm378, %v355, %v359
    %v397 = vsel %vm378, %v356, %v360
    %v398 = vsel %vm378, %v357, %v361
    %v399 = vsel %vm378, %v374, %v354
    %v400 = vsel %vm378, %v375, %v355
    %v401 = vsel %vm378, %v376, %v356
    %v402 = vsel %vm378, %v377, %v357
    %v403 = vrot.slane %v50, 1
    %v404 = vrot.slane %v56, 1
    %v405 = vrot.slane %v62, 1
    %v406 = vrot.slane %v68, 1
    %v407 = vrot.slane %v51, 1
    %v408 = vrot.slane %v57, 1
    %v409 = vrot.slane %v63, 1
    %v410 = vrot.slane %v69, 1
    %v411 = vrot.slane %v52, 1
    %v412 = vrot.slane %v58, 1
    %v413 = vrot.slane %v64, 1
    %v414 = vrot.slane %v70, 1
    %v415 = vrot.slane %v53, 1
    %v416 = vrot.slane %v59, 1
    %v417 = vrot.slane %v65, 1
    %v418 = vrot.slane %v71, 1
    %v419 = vrot.slane %v54, 1
    %v420 = vrot.slane %v60, 1
    %v421 = vrot.slane %v66, 1
    %v422 = vrot.slane %v72, 1
    %v423 = vrot.slane %v55, 1
    %v424 = vrot.slane %v61, 1
    %v425 = vrot.slane %v67, 1
    %v426 = vrot.slane %v73, 1
    %vm427 = vcmp.lt.s32.totalorder %v96, 7
    %v428 = vsel %vm427, %v419, %v423
    %v429 = vsel %vm427, %v420, %v424
    %v430 = vsel %vm427, %v421, %v425
    %v431 = vsel %vm427, %v422, %v426
    %v432 = vsel %vm427, %v415, %v419
    %v433 = vsel %vm427, %v416, %v420
    %v434 = vsel %vm427, %v417, %v421
    %v435 = vsel %vm427, %v418, %v422
    %v436 = vsel %vm427, %v411, %v415
    %v437 = vsel %vm427, %v412, %v416
    %v438 = vsel %vm427, %v413, %v417
    %v439 = vsel %vm427, %v414, %v418
    %v440 = vsel %vm427, %v407, %v411
    %v441 = vsel %vm427, %v408, %v412
    %v442 = vsel %vm427, %v409, %v413
    %v443 = vsel %vm427, %v410, %v414
    %v444 = vsel %vm427, %v403, %v407
    %v445 = vsel %vm427, %v404, %v408
    %v446 = vsel %vm427, %v405, %v409
    %v447 = vsel %vm427, %v406, %v410
    %v448 = vsel %vm427, %v423, %v403
    %v449 = vsel %vm427, %v424, %v404
    %v450 = vsel %vm427, %v425, %v405
    %v451 = vsel %vm427, %v426, %v406
    %v452 = vmul.f32 %v198, 0.01220339
    %v453 = vmul.f32 %v199, 0.01220339
    %v454 = vmul.f32 %v200, 0.01220339
    %v455 = vmul.f32 %v201, 0.01220339
    %v456 = vmul.f32 %v202, 0.01220339
    %v457 = vmul.f32 %v203, 0.01220339
    %v458 = vmul.f32 %v144, 3.04
    %v459 = vmul.f32 %v145, 3.04
    %v460 = vmul.f32 %v146, 3.04
    %v461 = vmul.f32 %v147, 3.04
    %v462 = vmul.f32 %v148, 3.04
    %v463 = vmul.f32 %v149, 3.04
    %v464 = vadd.f32 %v452, %v458
    %v465 = vadd.f32 %v453, %v459
    %v466 = vadd.f32 %v454, %v460
    %v467 = vadd.f32 %v455, %v461
    %v468 = vadd.f32 %v456, %v462
    %v469 = vadd.f32 %v457, %v463
    %v470 = vstv %s86
    %v471 = vmul.f32 %v470, %v276
    %v472 = vmul.f32 %v470, %v277
    %v473 = vmul.f32 %v470, %v278
    %v474 = vmul.f32 %v470, %v279
    %v475 = vmul.f32 %v470, %v280
    %v476 = vmul.f32 %v470, %v281
    %v477 = vadd.f32 %v464, %v471
    %v478 = vadd.f32 %v465, %v472
    %v479 = vadd.f32 %v466, %v473
    %v480 = vadd.f32 %v467, %v474
    %v481 = vadd.f32 %v468, %v475
    %v482 = vadd.f32 %v469, %v476
    %v483 = vmul.f32 %v216, 0.01220339
    %v484 = vmul.f32 %v217, 0.01220339
    %v485 = vmul.f32 %v218, 0.01220339
    %v486 = vmul.f32 %v219, 0.01220339
    %v487 = vmul.f32 %v220, 0.01220339
    %v488 = vmul.f32 %v221, 0.01220339
    %v489 = vstv %s44
    %v490 = vadd.f32 %v489, 0.0
    %v491 = vstv %s45
    %v492 = vadd.f32 %v491, 0.0
    %v497 = vrot.slane %v50, 3
    %v498 = vrot.slane %v56, 3
    %v499 = vrot.slane %v62, 3
    %v500 = vrot.slane %v68, 3
    %v505 = vsub.f32 %v54, %v497
    %v506 = vsub.f32 %v60, %v498
    %v507 = vsub.f32 %v66, %v499
    %v508 = vsub.f32 %v72, %v500
    %v509 = vstv %s88
    %v510 = vmul.f32 %v509, %v505
    %v511 = vmul.f32 %v509, %v506
    %v512 = vmul.f32 %v509, %v507
    %v513 = vmul.f32 %v509, %v508
    %v514 = vsub.f32 %v47, %v50
    %v515 = vsub.f32 %v490, %v56
    %v516 = vsub.f32 %v492, %v62
    %v517 = vsub.f32 0.0, %v68
    %v518 = vmul.f32 %v470, %v514
    %v519 = vmul.f32 %v470, %v515
    %v520 = vmul.f32 %v470, %v516
    %v521 = vmul.f32 %v470, %v517
    %v526 = vrot.slane %v518, 3
    %v527 = vrot.slane %v519, 3
    %v528 = vrot.slane %v520, 3
    %v529 = vrot.slane %v521, 3
    %v534 = vadd.f32 %v510, %v526
    %v535 = vadd.f32 %v511, %v527
    %v536 = vadd.f32 %v512, %v528
    %v537 = vadd.f32 %v513, %v529
    %v538 = vmul.f32 %v534, 0.040677965
    %v539 = vmul.f32 %v535, 0.040677965
    %v540 = vmul.f32 %v536, 0.040677965
    %v541 = vmul.f32 %v537, 0.040677965
    %v542 = vsub.f32 %v399, %v50
    %v543 = vsub.f32 %v395, %v51
    %v544 = vsub.f32 %v391, %v52
    %v545 = vsub.f32 %v387, %v53
    %v546 = vsub.f32 %v383, %v54
    %v547 = vsub.f32 %v379, %v55
    %v548 = vsub.f32 %v400, %v56
    %v549 = vsub.f32 %v396, %v57
    %v550 = vsub.f32 %v392, %v58
    %v551 = vsub.f32 %v388, %v59
    %v552 = vsub.f32 %v384, %v60
    %v553 = vsub.f32 %v380, %v61
    %v554 = vsub.f32 %v401, %v62
    %v555 = vsub.f32 %v397, %v63
    %v556 = vsub.f32 %v393, %v64
    %v557 = vsub.f32 %v389, %v65
    %v558 = vsub.f32 %v385, %v66
    %v559 = vsub.f32 %v381, %v67
    %v560 = vsub.f32 %v402, %v68
    %v561 = vsub.f32 %v398, %v69
    %v562 = vsub.f32 %v394, %v70
    %v563 = vsub.f32 %v390, %v71
    %v564 = vsub.f32 %v386, %v72
    %v565 = vsub.f32 %v382, %v73
    %v566 = vmul.f32 %v477, %v542
    %v567 = vmul.f32 %v478, %v543
    %v568 = vmul.f32 %v479, %v544
    %v569 = vmul.f32 %v480, %v545
    %v570 = vmul.f32 %v481, %v546
    %v571 = vmul.f32 %v482, %v547
    %v572 = vmul.f32 %v477, %v548
    %v573 = vmul.f32 %v478, %v549
    %v574 = vmul.f32 %v479, %v550
    %v575 = vmul.f32 %v480, %v551
    %v576 = vmul.f32 %v481, %v552
    %v577 = vmul.f32 %v482, %v553
    %v578 = vmul.f32 %v477, %v554
    %v579 = vmul.f32 %v478, %v555
    %v580 = vmul.f32 %v479, %v556
    %v581 = vmul.f32 %v480, %v557
    %v582 = vmul.f32 %v481, %v558
    %v583 = vmul.f32 %v482, %v559
    %v584 = vmul.f32 %v477, %v560
    %v585 = vmul.f32 %v478, %v561
    %v586 = vmul.f32 %v479, %v562
    %v587 = vmul.f32 %v480, %v563
    %v588 = vmul.f32 %v481, %v564
    %v589 = vmul.f32 %v482, %v565
    %v590 = vsub.f32 %v444, %v50
    %v591 = vsub.f32 %v440, %v51
    %v592 = vsub.f32 %v436, %v52
    %v593 = vsub.f32 %v432, %v53
    %v594 = vsub.f32 %v428, %v54
    %v595 = vsub.f32 %v448, %v55
    %v596 = vsub.f32 %v445, %v56
    %v597 = vsub.f32 %v441, %v57
    %v598 = vsub.f32 %v437, %v58
    %v599 = vsub.f32 %v433, %v59
    %v600 = vsub.f32 %v429, %v60
    %v601 = vsub.f32 %v449, %v61
    %v602 = vsub.f32 %v446, %v62
    %v603 = vsub.f32 %v442, %v63
    %v604 = vsub.f32 %v438, %v64
    %v605 = vsub.f32 %v434, %v65
    %v606 = vsub.f32 %v430, %v66
    %v607 = vsub.f32 %v450, %v67
    %v608 = vsub.f32 %v447, %v68
    %v609 = vsub.f32 %v443, %v69
    %v610 = vsub.f32 %v439, %v70
    %v611 = vsub.f32 %v435, %v71
    %v612 = vsub.f32 %v431, %v72
    %v613 = vsub.f32 %v451, %v73
    %v614 = vmul.f32 %v483, %v590
    %v615 = vmul.f32 %v484, %v591
    %v616 = vmul.f32 %v485, %v592
    %v617 = vmul.f32 %v486, %v593
    %v618 = vmul.f32 %v487, %v594
    %v619 = vmul.f32 %v488, %v595
    %v620 = vmul.f32 %v483, %v596
    %v621 = vmul.f32 %v484, %v597
    %v622 = vmul.f32 %v485, %v598
    %v623 = vmul.f32 %v486, %v599
    %v624 = vmul.f32 %v487, %v600
    %v625 = vmul.f32 %v488, %v601
    %v626 = vmul.f32 %v483, %v602
    %v627 = vmul.f32 %v484, %v603
    %v628 = vmul.f32 %v485, %v604
    %v629 = vmul.f32 %v486, %v605
    %v630 = vmul.f32 %v487, %v606
    %v631 = vmul.f32 %v488, %v607
    %v632 = vmul.f32 %v483, %v608
    %v633 = vmul.f32 %v484, %v609
    %v634 = vmul.f32 %v485, %v610
    %v635 = vmul.f32 %v486, %v611
    %v636 = vmul.f32 %v487, %v612
    %v637 = vmul.f32 %v488, %v613
    %v638 = vadd.f32 %v566, %v614
    %v639 = vadd.f32 %v567, %v615
    %v640 = vadd.f32 %v568, %v616
    %v641 = vadd.f32 %v569, %v617
    %v642 = vadd.f32 %v570, %v618
    %v643 = vadd.f32 %v571, %v619
    %v644 = vadd.f32 %v572, %v620
    %v645 = vadd.f32 %v573, %v621
    %v646 = vadd.f32 %v574, %v622
    %v647 = vadd.f32 %v575, %v623
    %v648 = vadd.f32 %v576, %v624
    %v649 = vadd.f32 %v577, %v625
    %v650 = vadd.f32 %v578, %v626
    %v651 = vadd.f32 %v579, %v627
    %v652 = vadd.f32 %v580, %v628
    %v653 = vadd.f32 %v581, %v629
    %v654 = vadd.f32 %v582, %v630
    %v655 = vadd.f32 %v583, %v631
    %v656 = vadd.f32 %v584, %v632
    %v657 = vadd.f32 %v585, %v633
    %v658 = vadd.f32 %v586, %v634
    %v659 = vadd.f32 %v587, %v635
    %v660 = vadd.f32 %v588, %v636
    %v661 = vadd.f32 %v589, %v637
    %v662 = vmul.f32 %v470, %v252
    %v663 = vmul.f32 %v470, %v253
    %v664 = vmul.f32 %v470, %v254
    %v665 = vmul.f32 %v470, %v255
    %v666 = vmul.f32 %v470, %v256
    %v667 = vmul.f32 %v470, %v257
    %v668 = vlaneseq
    %v669 = vshrl.u32 %v668, 7
    %v670 = vsub.s32 0, %v669
    %v671 = vrot.slane %v53, %v670
    %v672 = vlaneseq
    %v673 = vshrl.u32 %v672, 7
    %v674 = vsub.s32 0, %v673
    %v675 = vrot.slane %v59, %v674
    %v676 = vlaneseq
    %v677 = vshrl.u32 %v676, 7
    %v678 = vsub.s32 0, %v677
    %v679 = vrot.slane %v65, %v678
    %v680 = vlaneseq
    %v681 = vshrl.u32 %v680, 7
    %v682 = vsub.s32 0, %v681
    %v683 = vrot.slane %v71, %v682
    %v684 = vsub.f32 %v671, %v50
    %v685 = vsub.f32 %v671, %v51
    %v686 = vsub.f32 %v671, %v52
    %v687 = vsub.f32 %v671, %v53
    %v688 = vsub.f32 %v671, %v54
    %v689 = vsub.f32 %v671, %v55
    %v690 = vsub.f32 %v675, %v56
    %v691 = vsub.f32 %v675, %v57
    %v692 = vsub.f32 %v675, %v58
    %v693 = vsub.f32 %v675, %v59
    %v694 = vsub.f32 %v675, %v60
    %v695 = vsub.f32 %v675, %v61
    %v696 = vsub.f32 %v679, %v62
    %v697 = vsub.f32 %v679, %v63
    %v698 = vsub.f32 %v679, %v64
    %v699 = vsub.f32 %v679, %v65
    %v700 = vsub.f32 %v679, %v66
    %v701 = vsub.f32 %v679, %v67
    %v702 = vsub.f32 %v683, %v68
    %v703 = vsub.f32 %v683, %v69
    %v704 = vsub.f32 %v683, %v70
    %v705 = vsub.f32 %v683, %v71
    %v706 = vsub.f32 %v683, %v72
    %v707 = vsub.f32 %v683, %v73
    %v708 = vmul.f32 %v662, %v684
    %v709 = vmul.f32 %v663, %v685
    %v710 = vmul.f32 %v664, %v686
    %v711 = vmul.f32 %v665, %v687
    %v712 = vmul.f32 %v666, %v688
    %v713 = vmul.f32 %v667, %v689
    %v714 = vmul.f32 %v662, %v690
    %v715 = vmul.f32 %v663, %v691
    %v716 = vmul.f32 %v664, %v692
    %v717 = vmul.f32 %v665, %v693
    %v718 = vmul.f32 %v666, %v694
    %v719 = vmul.f32 %v667, %v695
    %v720 = vmul.f32 %v662, %v696
    %v721 = vmul.f32 %v663, %v697
    %v722 = vmul.f32 %v664, %v698
    %v723 = vmul.f32 %v665, %v699
    %v724 = vmul.f32 %v666, %v700
    %v725 = vmul.f32 %v667, %v701
    %v726 = vmul.f32 %v662, %v702
    %v727 = vmul.f32 %v663, %v703
    %v728 = vmul.f32 %v664, %v704
    %v729 = vmul.f32 %v665, %v705
    %v730 = vmul.f32 %v666, %v706
    %v731 = vmul.f32 %v667, %v707
    %v732 = vadd.f32 %v638, %v708
    %v733 = vadd.f32 %v639, %v709
    %v734 = vadd.f32 %v640, %v710
    %v735 = vadd.f32 %v641, %v711
    %v736 = vadd.f32 %v642, %v712
    %v737 = vadd.f32 %v643, %v713
    %v738 = vadd.f32 %v644, %v714
    %v739 = vadd.f32 %v645, %v715
    %v740 = vadd.f32 %v646, %v716
    %v741 = vadd.f32 %v647, %v717
    %v742 = vadd.f32 %v648, %v718
    %v743 = vadd.f32 %v649, %v719
    %v744 = vadd.f32 %v650, %v720
    %v745 = vadd.f32 %v651, %v721
    %v746 = vadd.f32 %v652, %v722
    %v747 = vadd.f32 %v653, %v723
    %v748 = vadd.f32 %v654, %v724
    %v749 = vadd.f32 %v655, %v725
    %v750 = vadd.f32 %v656, %v726
    %v751 = vadd.f32 %v657, %v727
    %v752 = vadd.f32 %v658, %v728
    %v753 = vadd.f32 %v659, %v729
    %v754 = vadd.f32 %v660, %v730
    %v755 = vadd.f32 %v661, %v731
    %v756 = vlaneseq
    %v757 = vshrl.u32 %v756, 7
    %v758 = vsub.s32 5, %v757
    %v759 = vrot.slane %v538, %v758
    %v760 = vlaneseq
    %v761 = vshrl.u32 %v760, 7
    %v762 = vsub.s32 5, %v761
    %v763 = vrot.slane %v539, %v762
    %v764 = vlaneseq
    %v765 = vshrl.u32 %v764, 7
    %v766 = vsub.s32 5, %v765
    %v767 = vrot.slane %v540, %v766
    %v768 = vlaneseq
    %v769 = vshrl.u32 %v768, 7
    %v770 = vsub.s32 5, %v769
    %v771 = vrot.slane %v541, %v770
    %v772 = vmul.f32 %v234, %v759
    %v773 = vmul.f32 %v235, %v759
    %v774 = vmul.f32 %v236, %v759
    %v775 = vmul.f32 %v237, %v759
    %v776 = vmul.f32 %v238, %v759
    %v777 = vmul.f32 %v239, %v759
    %v778 = vmul.f32 %v234, %v763
    %v779 = vmul.f32 %v235, %v763
    %v780 = vmul.f32 %v236, %v763
    %v781 = vmul.f32 %v237, %v763
    %v782 = vmul.f32 %v238, %v763
    %v783 = vmul.f32 %v239, %v763
    %v784 = vmul.f32 %v234, %v767
    %v785 = vmul.f32 %v235, %v767
    %v786 = vmul.f32 %v236, %v767
    %v787 = vmul.f32 %v237, %v767
    %v788 = vmul.f32 %v238, %v767
    %v789 = vmul.f32 %v239, %v767
    %v790 = vmul.f32 %v234, %v771
    %v791 = vmul.f32 %v235, %v771
    %v792 = vmul.f32 %v236, %v771
    %v793 = vmul.f32 %v237, %v771
    %v794 = vmul.f32 %v238, %v771
    %v795 = vmul.f32 %v239, %v771
    %v796 = vadd.f32 %v732, %v772
    %v797 = vadd.f32 %v733, %v773
    %v798 = vadd.f32 %v734, %v774
    %v799 = vadd.f32 %v735, %v775
    %v800 = vadd.f32 %v736, %v776
    %v801 = vadd.f32 %v737, %v777
    %v802 = vadd.f32 %v738, %v778
    %v803 = vadd.f32 %v739, %v779
    %v804 = vadd.f32 %v740, %v780
    %v805 = vadd.f32 %v741, %v781
    %v806 = vadd.f32 %v742, %v782
    %v807 = vadd.f32 %v743, %v783
    %v808 = vadd.f32 %v744, %v784
    %v809 = vadd.f32 %v745, %v785
    %v810 = vadd.f32 %v746, %v786
    %v811 = vadd.f32 %v747, %v787
    %v812 = vadd.f32 %v748, %v788
    %v813 = vadd.f32 %v749, %v789
    %v814 = vadd.f32 %v750, %v790
    %v815 = vadd.f32 %v751, %v791
    %v816 = vadd.f32 %v752, %v792
    %v817 = vadd.f32 %v753, %v793
    %v818 = vadd.f32 %v754, %v794
    %v819 = vadd.f32 %v755, %v795
    %v820 = vmul.f32 %v50, %v300
    %v821 = vmul.f32 %v51, %v301
    %v822 = vmul.f32 %v52, %v302
    %v823 = vmul.f32 %v53, %v303
    %v824 = vmul.f32 %v54, %v304
    %v825 = vmul.f32 %v55, %v305
    %v826 = vadd.f32 %v820, %v821
    %v827 = vadd.f32 %v826, %v822
    %v828 = vadd.f32 %v827, %v823
    %v829 = vadd.f32 %v828, %v824
    %v830 = vadd.f32 %v829, %v825
    %v831 = vrot.slane %v830, 4
    %v832 = vadd.f32 %v830, %v831
    %v833 = vrot.slane %v832, 2
    %v834 = vadd.f32 %v832, %v833
    %v835 = vrot.slane %v834, 1
    %v836 = vadd.f32 %v834, %v835
    %v837 = vmul.f32 %v836, 0.14285715
    %vm838 = vcmp.lt.f32.partialorder %v837, 47.0
    %v839 = vmul.f32 %v348, 0.049904943
    %v840 = vmul.f32 %v349, 0.049904943
    %v841 = vmul.f32 %v350, 0.049904943
    %v842 = vmul.f32 %v351, 0.049904943
    %v843 = vmul.f32 %v352, 0.049904943
    %v844 = vmul.f32 %v353, 0.049904943
    %v845 = vsel %vm838, 1, 0
    %vm846 = vcmp.eq.s32.totalorder %v845, 1
    %v847 = vsel %vm846, %v839, -0.0049904943
    %v848 = vsel %vm846, %v840, -0.0049904943
    %v849 = vsel %vm846, %v841, -0.0049904943
    %v850 = vsel %vm846, %v842, -0.0049904943
    %v851 = vsel %vm846, %v843, -0.0049904943
    %v852 = vsel %vm846, %v844, -0.0049904943
    %v853 = vmul.f32 %v114, %v847
    %v854 = vmul.f32 %v115, %v848
    %v855 = vmul.f32 %v116, %v849
    %v856 = vmul.f32 %v117, %v850
    %v857 = vmul.f32 %v118, %v851
    %v858 = vmul.f32 %v119, %v852
    %v859 = vmul.f32 %v144, -0.00016590346
    %v860 = vmul.f32 %v145, -0.00016590346
    %v861 = vmul.f32 %v146, -0.00016590346
    %v862 = vmul.f32 %v147, -0.00016590346
    %v863 = vmul.f32 %v148, -0.00016590346
    %v864 = vmul.f32 %v149, -0.00016590346
    %v865 = vmul.f32 %v174, -0.0005253609
    %v866 = vmul.f32 %v175, -0.0005253609
    %v867 = vmul.f32 %v176, -0.0005253609
    %v868 = vmul.f32 %v177, -0.0005253609
    %v869 = vmul.f32 %v178, -0.0005253609
    %v870 = vmul.f32 %v179, -0.0005253609
    %v871 = vadd.f32 %v859, %v865
    %v872 = vadd.f32 %v860, %v866
    %v873 = vadd.f32 %v861, %v867
    %v874 = vadd.f32 %v862, %v868
    %v875 = vadd.f32 %v863, %v869
    %v876 = vadd.f32 %v864, %v870
    %v877 = vstv %s46
    %v878 = vsub.f32 %v50, %v877
    %v879 = vsub.f32 %v51, %v877
    %v880 = vsub.f32 %v52, %v877
    %v881 = vsub.f32 %v53, %v877
    %v882 = vsub.f32 %v54, %v877
    %v883 = vsub.f32 %v55, %v877
    %v884 = vmul.f32 %v871, %v878
    %v885 = vmul.f32 %v872, %v879
    %v886 = vmul.f32 %v873, %v880
    %v887 = vmul.f32 %v874, %v881
    %v888 = vmul.f32 %v875, %v882
    %v889 = vmul.f32 %v876, %v883
    %v890 = vadd.f32 %v853, %v884
    %v891 = vadd.f32 %v854, %v885
    %v892 = vadd.f32 %v855, %v886
    %v893 = vadd.f32 %v856, %v887
    %v894 = vadd.f32 %v857, %v888
    %v895 = vadd.f32 %v858, %v889
    %v896 = vmul.f32 %v48, -30000.0
    %v897 = vadd.f32 %v50, 273.0
    %v898 = vadd.f32 %v51, 273.0
    %v899 = vadd.f32 %v52, 273.0
    %v900 = vadd.f32 %v53, 273.0
    %v901 = vadd.f32 %v54, 273.0
    %v902 = vadd.f32 %v55, 273.0
    %v903 = vrcp.pop %v897
    %v904 = vmul.f32 -6050.0, %v903
    %v905 = vrcp.pop %v898
    %v906 = vmul.f32 -6050.0, %v905
    %v907 = vrcp.pop %v899
    %v908 = vmul.f32 -6050.0, %v907
    %v909 = vrcp.pop %v900
    %v910 = vmul.f32 -6050.0, %v909
    %v911 = vrcp.pop %v901
    %v912 = vmul.f32 -6050.0, %v911
    %v913 = vrcp.pop %v902
    %v914 = vmul.f32 -6050.0, %v913
    %v915 = vmul.f32 %v904, 1.442695
    %v916 = vpow.pop %v915
    %v917 = vmul.f32 %v906, 1.442695
    %v918 = vpow.pop %v917
    %v919 = vmul.f32 %v908, 1.442695
    %v920 = vpow.pop %v919
    %v921 = vmul.f32 %v910, 1.442695
    %v922 = vpow.pop %v921
    %v923 = vmul.f32 %v912, 1.442695
    %v924 = vpow.pop %v923
    %v925 = vmul.f32 %v914, 1.442695
    %v926 = vpow.pop %v925
    %v927 = vlaneseq
    %v928 = vshrl.u32 %v927, 7
    %v929 = vsub.s32 0, %v928
    %v930 = vrot.slane %v896, %v929
    %v931 = vmul.f32 %v930, %v916
    %v932 = vmul.f32 %v930, %v918
    %v933 = vmul.f32 %v930, %v920
    %v934 = vmul.f32 %v930, %v922
    %v935 = vmul.f32 %v930, %v924
    %v936 = vmul.f32 %v930, %v926
    %v937 = vmul.f32 %v931, %v56
    %v938 = vmul.f32 %v932, %v57
    %v939 = vmul.f32 %v933, %v58
    %v940 = vmul.f32 %v934, %v59
    %v941 = vmul.f32 %v935, %v60
    %v942 = vmul.f32 %v936, %v61
    %vm943 = vcmp.lt.f32.partialorder %v50, 70.0
    %vm944 = vcmp.lt.f32.partialorder %v51, 70.0
    %vm945 = vcmp.lt.f32.partialorder %v52, 70.0
    %vm946 = vcmp.lt.f32.partialorder %v53, 70.0
    %vm947 = vcmp.lt.f32.partialorder %v54, 70.0
    %vm948 = vcmp.lt.f32.partialorder %v55, 70.0
    %v949 = vsel %vm943, -0.0833, -0.0741
    %v950 = vsel %vm944, -0.0833, -0.0741
    %v951 = vsel %vm945, -0.0833, -0.0741
    %v952 = vsel %vm946, -0.0833, -0.0741
    %v953 = vsel %vm947, -0.0833, -0.0741
    %v954 = vsel %vm948, -0.0833, -0.0741
    %vm955 = vcmp.lt.f32.partialorder %v50, 65.0
    %vm956 = vcmp.lt.f32.partialorder %v51, 65.0
    %vm957 = vcmp.lt.f32.partialorder %v52, 65.0
    %vm958 = vcmp.lt.f32.partialorder %v53, 65.0
    %vm959 = vcmp.lt.f32.partialorder %v54, 65.0
    %vm960 = vcmp.lt.f32.partialorder %v55, 65.0
    %v961 = vsel %vm955, -0.0333, %v949
    %v962 = vsel %vm956, -0.0333, %v950
    %v963 = vsel %vm957, -0.0333, %v951
    %v964 = vsel %vm958, -0.0333, %v952
    %v965 = vsel %vm959, -0.0333, %v953
    %v966 = vsel %vm960, -0.0333, %v954
    %vm967 = vcmp.lt.f32.partialorder %v50, 60.0
    %vm968 = vcmp.lt.f32.partialorder %v51, 60.0
    %vm969 = vcmp.lt.f32.partialorder %v52, 60.0
    %vm970 = vcmp.lt.f32.partialorder %v53, 60.0
    %vm971 = vcmp.lt.f32.partialorder %v54, 60.0
    %vm972 = vcmp.lt.f32.partialorder %v55, 60.0
    %v973 = vsel %vm967, -0.00666, %v961
    %v974 = vsel %vm968, -0.00666, %v962
    %v975 = vsel %vm969, -0.00666, %v963
    %v976 = vsel %vm970, -0.00666, %v964
    %v977 = vsel %vm971, -0.00666, %v965
    %v978 = vsel %vm972, -0.00666, %v966
    %vm979 = vcmp.lt.f32.partialorder %v50, 55.0
    %vm980 = vcmp.lt.f32.partialorder %v51, 55.0
    %vm981 = vcmp.lt.f32.partialorder %v52, 55.0
    %vm982 = vcmp.lt.f32.partialorder %v53, 55.0
    %vm983 = vcmp.lt.f32.partialorder %v54, 55.0
    %vm984 = vcmp.lt.f32.partialorder %v55, 55.0
    %v985 = vsel %vm979, -5.69e-05, %v973
    %v986 = vsel %vm980, -5.69e-05, %v974
    %v987 = vsel %vm981, -5.69e-05, %v975
    %v988 = vsel %vm982, -5.69e-05, %v976
    %v989 = vsel %vm983, -5.69e-05, %v977
    %v990 = vsel %vm984, -5.69e-05, %v978
    %vm991 = vcmp.lt.f32.partialorder %v50, 50.0
    %vm992 = vcmp.lt.f32.partialorder %v51, 50.0
    %vm993 = vcmp.lt.f32.partialorder %v52, 50.0
    %vm994 = vcmp.lt.f32.partialorder %v53, 50.0
    %vm995 = vcmp.lt.f32.partialorder %v54, 50.0
    %vm996 = vcmp.lt.f32.partialorder %v55, 50.0
    %v997 = vsel %vm991, 0.0, %v985
    %v998 = vsel %vm992, 0.0, %v986
    %v999 = vsel %vm993, 0.0, %v987
    %v1000 = vsel %vm994, 0.0, %v988
    %v1001 = vsel %vm995, 0.0, %v989
    %v1002 = vsel %vm996, 0.0, %v990
    %vm1003 = vcmp.lt.f32.partialorder %v50, 45.0
    %vm1004 = vcmp.lt.f32.partialorder %v51, 45.0
    %vm1005 = vcmp.lt.f32.partialorder %v52, 45.0
    %vm1006 = vcmp.lt.f32.partialorder %v53, 45.0
    %vm1007 = vcmp.lt.f32.partialorder %v54, 45.0
    %vm1008 = vcmp.lt.f32.partialorder %v55, 45.0
    %v1009 = vsel %vm1003, 4.82e-05, %v997
    %v1010 = vsel %vm1004, 4.82e-05, %v998
    %v1011 = vsel %vm1005, 4.82e-05, %v999
    %v1012 = vsel %vm1006, 4.82e-05, %v1000
    %v1013 = vsel %vm1007, 4.82e-05, %v1001
    %v1014 = vsel %vm1008, 4.82e-05, %v1002
    %vm1015 = vcmp.lt.f32.partialorder %v50, 42.0
    %vm1016 = vcmp.lt.f32.partialorder %v51, 42.0
    %vm1017 = vcmp.lt.f32.partialorder %v52, 42.0
    %vm1018 = vcmp.lt.f32.partialorder %v53, 42.0
    %vm1019 = vcmp.lt.f32.partialorder %v54, 42.0
    %vm1020 = vcmp.lt.f32.partialorder %v55, 42.0
    %v1021 = vsel %vm1015, 4.73e-05, %v1009
    %v1022 = vsel %vm1016, 4.73e-05, %v1010
    %v1023 = vsel %vm1017, 4.73e-05, %v1011
    %v1024 = vsel %vm1018, 4.73e-05, %v1012
    %v1025 = vsel %vm1019, 4.73e-05, %v1013
    %v1026 = vsel %vm1020, 4.73e-05, %v1014
    %vm1027 = vcmp.lt.f32.partialorder %v50, 37.0
    %vm1028 = vcmp.lt.f32.partialorder %v51, 37.0
    %vm1029 = vcmp.lt.f32.partialorder %v52, 37.0
    %vm1030 = vcmp.lt.f32.partialorder %v53, 37.0
    %vm1031 = vcmp.lt.f32.partialorder %v54, 37.0
    %vm1032 = vcmp.lt.f32.partialorder %v55, 37.0
    %v1033 = vsel %vm1027, 3.08e-05, %v1021
    %v1034 = vsel %vm1028, 3.08e-05, %v1022
    %v1035 = vsel %vm1029, 3.08e-05, %v1023
    %v1036 = vsel %vm1030, 3.08e-05, %v1024
    %v1037 = vsel %vm1031, 3.08e-05, %v1025
    %v1038 = vsel %vm1032, 3.08e-05, %v1026
    %vm1039 = vcmp.lt.f32.partialorder %v50, 30.0
    %vm1040 = vcmp.lt.f32.partialorder %v51, 30.0
    %vm1041 = vcmp.lt.f32.partialorder %v52, 30.0
    %vm1042 = vcmp.lt.f32.partialorder %v53, 30.0
    %vm1043 = vcmp.lt.f32.partialorder %v54, 30.0
    %vm1044 = vcmp.lt.f32.partialorder %v55, 30.0
    %v1045 = vsel %vm1039, 2.3e-05, %v1033
    %v1046 = vsel %vm1040, 2.3e-05, %v1034
    %v1047 = vsel %vm1041, 2.3e-05, %v1035
    %v1048 = vsel %vm1042, 2.3e-05, %v1036
    %v1049 = vsel %vm1043, 2.3e-05, %v1037
    %v1050 = vsel %vm1044, 2.3e-05, %v1038
    %vm1051 = vcmp.lt.f32.partialorder %v56, 0.35
    %vm1052 = vcmp.lt.f32.partialorder %v57, 0.35
    %vm1053 = vcmp.lt.f32.partialorder %v58, 0.35
    %vm1054 = vcmp.lt.f32.partialorder %v59, 0.35
    %vm1055 = vcmp.lt.f32.partialorder %v60, 0.35
    %vm1056 = vcmp.lt.f32.partialorder %v61, 0.35
    %v1057 = vsel %vm1051, -0.00192, -0.0231
    %v1058 = vsel %vm1052, -0.00192, -0.0231
    %v1059 = vsel %vm1053, -0.00192, -0.0231
    %v1060 = vsel %vm1054, -0.00192, -0.0231
    %v1061 = vsel %vm1055, -0.00192, -0.0231
    %v1062 = vsel %vm1056, -0.00192, -0.0231
    %vm1063 = vcmp.lt.f32.partialorder %v56, 0.15
    %vm1064 = vcmp.lt.f32.partialorder %v57, 0.15
    %vm1065 = vcmp.lt.f32.partialorder %v58, 0.15
    %vm1066 = vcmp.lt.f32.partialorder %v59, 0.15
    %vm1067 = vcmp.lt.f32.partialorder %v60, 0.15
    %vm1068 = vcmp.lt.f32.partialorder %v61, 0.15
    %v1069 = vsel %vm1063, -0.00182, %v1057
    %v1070 = vsel %vm1064, -0.00182, %v1058
    %v1071 = vsel %vm1065, -0.00182, %v1059
    %v1072 = vsel %vm1066, -0.00182, %v1060
    %v1073 = vsel %vm1067, -0.00182, %v1061
    %v1074 = vsel %vm1068, -0.00182, %v1062
    %vm1075 = vcmp.lt.f32.partialorder %v56, 0.01
    %vm1076 = vcmp.lt.f32.partialorder %v57, 0.01
    %vm1077 = vcmp.lt.f32.partialorder %v58, 0.01
    %vm1078 = vcmp.lt.f32.partialorder %v59, 0.01
    %vm1079 = vcmp.lt.f32.partialorder %v60, 0.01
    %vm1080 = vcmp.lt.f32.partialorder %v61, 0.01
    %v1081 = vsel %vm1075, 0.0, %v1069
    %v1082 = vsel %vm1076, 0.0, %v1070
    %v1083 = vsel %vm1077, 0.0, %v1071
    %v1084 = vsel %vm1078, 0.0, %v1072
    %v1085 = vsel %vm1079, 0.0, %v1073
    %v1086 = vsel %vm1080, 0.0, %v1074
    %v1087 = vadd.f32 %v1045, %v1081
    %v1088 = vadd.f32 %v1046, %v1082
    %v1089 = vadd.f32 %v1047, %v1083
    %v1090 = vadd.f32 %v1048, %v1084
    %v1091 = vadd.f32 %v1049, %v1085
    %v1092 = vadd.f32 %v1050, %v1086
    %v1093 = vmul.f32 %v1087, %v62
    %v1094 = vmul.f32 %v1088, %v63
    %v1095 = vmul.f32 %v1089, %v64
    %v1096 = vmul.f32 %v1090, %v65
    %v1097 = vmul.f32 %v1091, %v66
    %v1098 = vmul.f32 %v1092, %v67
    %v1099 = vstv %s94
    %v1100 = vmul.f32 %v1099, %v318
    %v1101 = vmul.f32 %v1099, %v319
    %v1102 = vmul.f32 %v1099, %v320
    %v1103 = vmul.f32 %v1099, %v321
    %v1104 = vmul.f32 %v1099, %v322
    %v1105 = vmul.f32 %v1099, %v323
    %v1106 = vmul.f32 %v1100, %v74
    %v1107 = vmul.f32 %v1101, %v75
    %v1108 = vmul.f32 %v1102, %v76
    %v1109 = vmul.f32 %v1103, %v77
    %v1110 = vmul.f32 %v1104, %v78
    %v1111 = vmul.f32 %v1105, %v79
    %v1112 = vstv %s92
    %v1113 = vmul.f32 %v1112, %v49
    %v1114 = vmul.f32 %v56, %v1045
    %v1115 = vmul.f32 %v57, %v1046
    %v1116 = vmul.f32 %v58, %v1047
    %v1117 = vmul.f32 %v59, %v1048
    %v1118 = vmul.f32 %v60, %v1049
    %v1119 = vmul.f32 %v61, %v1050
    %v1120 = vmul.f32 %v1114, %v68
    %v1121 = vmul.f32 %v1115, %v69
    %v1122 = vmul.f32 %v1116, %v70
    %v1123 = vmul.f32 %v1117, %v71
    %v1124 = vmul.f32 %v1118, %v72
    %v1125 = vmul.f32 %v1119, %v73
    %v1126 = vlaneseq
    %v1127 = vshrl.u32 %v1126, 7
    %v1128 = vsub.s32 0, %v1127
    %v1129 = vrot.slane %v1113, %v1128
    %v1130 = vmul.f32 %v1129, %v1120
    %v1131 = vmul.f32 %v1129, %v1121
    %v1132 = vmul.f32 %v1129, %v1122
    %v1133 = vmul.f32 %v1129, %v1123
    %v1134 = vmul.f32 %v1129, %v1124
    %v1135 = vmul.f32 %v1129, %v1125
    %v1136 = vadd.f32 %v1106, %v1130
    %v1137 = vadd.f32 %v1107, %v1131
    %v1138 = vadd.f32 %v1108, %v1132
    %v1139 = vadd.f32 %v1109, %v1133
    %v1140 = vadd.f32 %v1110, %v1134
    %v1141 = vadd.f32 %v1111, %v1135
    %v1142 = vsub.f32 0.0, %v1100
    %v1143 = vsub.f32 0.0, %v1101
    %v1144 = vsub.f32 0.0, %v1102
    %v1145 = vsub.f32 0.0, %v1103
    %v1146 = vsub.f32 0.0, %v1104
    %v1147 = vsub.f32 0.0, %v1105
    %v1148 = vmul.f32 %v1142, %v74
    %v1149 = vmul.f32 %v1143, %v75
    %v1150 = vmul.f32 %v1144, %v76
    %v1151 = vmul.f32 %v1145, %v77
    %v1152 = vmul.f32 %v1146, %v78
    %v1153 = vmul.f32 %v1147, %v79
    %v1154 = vadd.f32 %v796, %v890
    %v1155 = vadd.f32 %v797, %v891
    %v1156 = vadd.f32 %v798, %v892
    %v1157 = vadd.f32 %v799, %v893
    %v1158 = vadd.f32 %v800, %v894
    %v1159 = vadd.f32 %v801, %v895
    %v1160 = vadd.f32 %v802, %v937
    %v1161 = vadd.f32 %v803, %v938
    %v1162 = vadd.f32 %v804, %v939
    %v1163 = vadd.f32 %v805, %v940
    %v1164 = vadd.f32 %v806, %v941
    %v1165 = vadd.f32 %v807, %v942
    %v1166 = vadd.f32 %v808, %v1093
    %v1167 = vadd.f32 %v809, %v1094
    %v1168 = vadd.f32 %v810, %v1095
    %v1169 = vadd.f32 %v811, %v1096
    %v1170 = vadd.f32 %v812, %v1097
    %v1171 = vadd.f32 %v813, %v1098
    %v1172 = vadd.f32 %v814, %v1136
    %v1173 = vadd.f32 %v815, %v1137
    %v1174 = vadd.f32 %v816, %v1138
    %v1175 = vadd.f32 %v817, %v1139
    %v1176 = vadd.f32 %v818, %v1140
    %v1177 = vadd.f32 %v819, %v1141
    %1178 = vst [vmem:[#allocation7] sm:$0xff] %v1154
    %1179 = vst [vmem:[#allocation7 + $0x8] sm:$0xff] %v1155
    %1180 = vst [vmem:[#allocation7 + $0x10] sm:$0xff] %v1156
    %1181 = vst [vmem:[#allocation7 + $0x18] sm:$0xff] %v1157
    %1182 = vst [vmem:[#allocation7 + $0x20] sm:$0xff] %v1158
    %1183 = vst [vmem:[#allocation7 + $0x28] sm:$0xff] %v1159
    %1184 = vst [vmem:[#allocation7 + $0x30] sm:$0xff] %v1160
    %1185 = vst [vmem:[#allocation7 + $0x38] sm:$0xff] %v1161
    %1186 = vst [vmem:[#allocation7 + $0x40] sm:$0xff] %v1162
    %1187 = vst [vmem:[#allocation7 + $0x48] sm:$0xff] %v1163
    %1188 = vst [vmem:[#allocation7 + $0x50] sm:$0xff] %v1164
    %1189 = vst [vmem:[#allocation7 + $0x58] sm:$0xff] %v1165
    %1190 = vst [vmem:[#allocation7 + $0x60] sm:$0xff] %v1166
    %1191 = vst [vmem:[#allocation7 + $0x68] sm:$0xff] %v1167
    %1192 = vst [vmem:[#allocation7 + $0x70] sm:$0xff] %v1168
    %1193 = vst [vmem:[#allocation7 + $0x78] sm:$0xff] %v1169
    %1194 = vst [vmem:[#allocation7 + $0x80] sm:$0xff] %v1170
    %1195 = vst [vmem:[#allocation7 + $0x88] sm:$0xff] %v1171
    %1196 = vst [vmem:[#allocation7 + $0x90] sm:$0xff] %v1172
    %1197 = vst [vmem:[#allocation7 + $0x98] sm:$0xff] %v1173
    %1198 = vst [vmem:[#allocation7 + $0xa0] sm:$0xff] %v1174
    %1199 = vst [vmem:[#allocation7 + $0xa8] sm:$0xff] %v1175
    %1200 = vst [vmem:[#allocation7 + $0xb0] sm:$0xff] %v1176
    %1201 = vst [vmem:[#allocation7 + $0xb8] sm:$0xff] %v1177
    %1202 = vst [vmem:[#allocation7 + $0xc0] sm:$0xff] %v1148
    %1203 = vst [vmem:[#allocation7 + $0xc8] sm:$0xff] %v1149
    %1204 = vst [vmem:[#allocation7 + $0xd0] sm:$0xff] %v1150
    %1205 = vst [vmem:[#allocation7 + $0xd8] sm:$0xff] %v1151
    %1206 = vst [vmem:[#allocation7 + $0xe0] sm:$0xff] %v1152
    %1207 = vst [vmem:[#allocation7 + $0xe8] sm:$0xff] %v1153
    // Predicated region
    $region22: #{legionella_rhs.1} parent=1 // pred_check
      _
    $region23: #{legionella_rhs.1} parent=1 // pred_check_branch
      %1209 = sbr.rel (0) target = $region25
    $region24: #{legionella_rhs.1} parent=1 // pred_region
      %s1211 = ssub.s32 3840, 3840
      %1212 = vsyncadd [#allocation4], %s1211
      %s1213 = sshll.u32 [#allocation7], 4
      %s1214 = int_to_ptr.vmem [resolvable:$true] %s1213
      %1219 = dma.vmem_to_hbm [thread:$0]  %s1214, 3840, %s3, [#allocation4], 128, 128, 8
    $region25: #{legionella_rhs.1} parent=1 // pred_fallthru
      _
    // Predicated region
    $region26: #{legionella_rhs.1} parent=1 // pred_check
      _
    $region27: #{legionella_rhs.1} parent=1 // pred_check_branch
      %1221 = sbr.rel (0) target = $region29
    $region28: #{legionella_rhs.1} parent=1 // pred_region
      %1222 = dma.done [#allocation4], 3840
    $region29: #{legionella_rhs.1} parent=1 // pred_fallthru
      _
    %1223 = vsyncpa [#allocation3], 1
    %1224 = vsyncpa [#allocation4], 1
    %1225 = vsyncpa [#allocation5], 1

</llo_original>
